<compile_context>
chip_gen: v7x
topology: tpu7x:2x2x1
jax: 0.10.0
libtpu: 0.0.40
codegen_flags: <defaults>
</compile_context>

<pallas_src>
import functools

import jax
import jax.numpy as jnp
from jax.experimental import pallas as pl
from jax.experimental.pallas import tpu as pltpu

LANE = 128  # lane width: channel dims are padded to a multiple of this


def _round_up(x, m):
    return (x + m - 1) // m * m


# ----------------------------- Pallas kernels ------------------------------ #

def _gemm_bias_kernel(x_ref, w_ref, b_ref, o_ref, acc_ref, *, relu):
    """out = (x @ w) + bias  (optional ReLU), K accumulated over grid axis 2."""
    k = pl.program_id(2)

    @pl.when(k == 0)
    def _():
        acc_ref[...] = jnp.zeros_like(acc_ref)

    acc_ref[...] += jnp.dot(x_ref[...], w_ref[...],
                            preferred_element_type=jnp.float32)

    @pl.when(k == pl.num_programs(2) - 1)
    def _():
        y = acc_ref[...] + b_ref[...]
        if relu:
            y = jnp.maximum(y, 0.0)
        o_ref[...] = y.astype(o_ref.dtype)


def _gemm_dual_bias_relu_kernel(x_ref, w_ref, xr_ref, wr_ref, b_ref,
                                o_ref, acc_ref):
    """out = ReLU( (x @ w) + (xr @ wr) + bias ) — residual branch fused."""
    k = pl.program_id(2)

    @pl.when(k == 0)
    def _():
        # residual 1x1 conv (full K_res per tile) seeds the accumulator
        acc_ref[...] = jnp.dot(xr_ref[...], wr_ref[...],
                               preferred_element_type=jnp.float32)

    acc_ref[...] += jnp.dot(x_ref[...], w_ref[...],
                            preferred_element_type=jnp.float32)

    @pl.when(k == pl.num_programs(2) - 1)
    def _():
        o_ref[...] = jnp.maximum(acc_ref[...] + b_ref[...], 0.0).astype(o_ref.dtype)


# --------------------------- pallas_call wrappers --------------------------- #

def gemm_bias(x, w, bias, *, relu, out_dtype=jnp.float32,
              tm=256, tn=128, tk=128):
    """Tiled bf16 GEMM + bias (+ReLU). x:(M,K) bf16, w:(K,N) bf16, bias:(1,N) f32."""
    M, K = x.shape
    K2, N = w.shape
    assert K == K2 and K % tk == 0 and N % tn == 0

    tm = min(tm, _round_up(M, 8))
    Mp = _round_up(M, tm)
    if Mp != M:
        x = jnp.pad(x, ((0, Mp - M), (0, 0)))

    grid = (Mp // tm, N // tn, K // tk)
    out = pl.pallas_call(
        functools.partial(_gemm_bias_kernel, relu=relu),
        out_shape=jax.ShapeDtypeStruct((Mp, N), out_dtype),
        grid_spec=pltpu.PrefetchScalarGridSpec(
            num_scalar_prefetch=0,
            grid=grid,
            in_specs=[
                pl.BlockSpec((tm, tk), lambda i, j, k: (i, k)),
                pl.BlockSpec((tk, tn), lambda i, j, k: (k, j)),
                pl.BlockSpec((1, tn), lambda i, j, k: (0, j)),
            ],
            out_specs=pl.BlockSpec((tm, tn), lambda i, j, k: (i, j)),
            scratch_shapes=[pltpu.VMEM((tm, tn), jnp.float32)],
        ),
        compiler_params=pltpu.CompilerParams(
            dimension_semantics=("parallel", "parallel", "arbitrary")),
        cost_estimate=pl.CostEstimate(
            flops=2 * Mp * N * K,
            transcendentals=0,
            bytes_accessed=Mp * K * 2 + K * N * 2 + Mp * N * 4),
    )(x, w, bias)
    return out[:M]


def gemm_dual_bias_relu(x, w, xr, wr, bias, *, out_dtype=jnp.float32,
                        tm=256, tn=128, tk=128):
    """Fused final stage: ReLU( x@w + xr@wr + bias ).  Shares one accumulator."""
    M, K = x.shape
    _, N = w.shape
    Mr, Kr = xr.shape
    assert Mr == M and wr.shape == (Kr, N)
    assert K % tk == 0 and N % tn == 0

    tm = min(tm, _round_up(M, 8))
    Mp = _round_up(M, tm)
    if Mp != M:
        x = jnp.pad(x, ((0, Mp - M), (0, 0)))
        xr = jnp.pad(xr, ((0, Mp - M), (0, 0)))

    grid = (Mp // tm, N // tn, K // tk)
    out = pl.pallas_call(
        _gemm_dual_bias_relu_kernel,
        out_shape=jax.ShapeDtypeStruct((Mp, N), out_dtype),
        grid_spec=pltpu.PrefetchScalarGridSpec(
            num_scalar_prefetch=0,
            grid=grid,
            in_specs=[
                pl.BlockSpec((tm, tk), lambda i, j, k: (i, k)),
                pl.BlockSpec((tk, tn), lambda i, j, k: (k, j)),
                pl.BlockSpec((tm, Kr), lambda i, j, k: (i, 0)),
                pl.BlockSpec((Kr, tn), lambda i, j, k: (0, j)),
                pl.BlockSpec((1, tn), lambda i, j, k: (0, j)),
            ],
            out_specs=pl.BlockSpec((tm, tn), lambda i, j, k: (i, j)),
            scratch_shapes=[pltpu.VMEM((tm, tn), jnp.float32)],
        ),
        compiler_params=pltpu.CompilerParams(
            dimension_semantics=("parallel", "parallel", "arbitrary")),
        cost_estimate=pl.CostEstimate(
            flops=2 * Mp * N * (K + Kr),
            transcendentals=0,
            bytes_accessed=(Mp * K + K * N + Mp * Kr + Kr * N) * 2 + Mp * N * 4),
    )(x, w, xr, wr, bias)
    return out[:M]


# ----------------------------- parameter prep ------------------------------ #

def fold_bn(bn, eps=1e-5):
    gamma, beta, mean, var = bn
    scale = gamma / jnp.sqrt(var + eps)
    bias = beta - mean * scale
    return scale, bias


def prep_1x1(w_oihw, bn, cin_p, cout_p):
    """PyTorch (cout,cin,1,1) conv + BN -> padded, BN-scale-folded bf16 GEMM weight."""
    scale, bias = fold_bn(bn)
    cout, cin = w_oihw.shape[:2]
    w = w_oihw.reshape(cout, cin).T * scale[None, :]          # (cin, cout)
    w = jnp.pad(w, ((0, cin_p - cin), (0, cout_p - cout)))
    b = jnp.pad(bias, (0, cout_p - cout)).reshape(1, cout_p)
    return w.astype(jnp.bfloat16), b.astype(jnp.float32)


def prep_3x3(w_oihw, bn, cin_p, cout_p):
    """PyTorch (cout,cin,3,3) conv + BN -> (9*cin_p, cout_p) bf16 GEMM weight."""
    scale, bias = fold_bn(bn)
    cout, cin = w_oihw.shape[:2]
    w = jnp.transpose(w_oihw, (2, 3, 1, 0)) * scale           # (3,3,cin,cout)
    w = jnp.pad(w, ((0, 0), (0, 0), (0, cin_p - cin), (0, cout_p - cout)))
    w = w.reshape(9 * cin_p, cout_p)
    b = jnp.pad(bias, (0, cout_p - cout)).reshape(1, cout_p)
    return w.astype(jnp.bfloat16), b.astype(jnp.float32)


def init_raw_params(key, cin, mid, cout):
    ks = jax.random.split(key, 8)

    def conv_w(k, co, ci, kh, kw):
        return jax.random.normal(k, (co, ci, kh, kw), jnp.float32) * 0.1

    def bn(k, c):
        k1, k2, k3, k4 = jax.random.split(k, 4)
        gamma = 0.5 + jax.random.uniform(k1, (c,), jnp.float32)
        beta = jax.random.normal(k2, (c,), jnp.float32) * 0.1
        mean = jax.random.normal(k3, (c,), jnp.float32) * 0.1
        var = 0.5 + jax.random.uniform(k4, (c,), jnp.float32)
        return (gamma, beta, mean, var)

    return dict(
        w1=conv_w(ks[0], mid, cin, 1, 1), bn1=bn(ks[1], mid),
        w2=conv_w(ks[2], mid, mid, 3, 3), bn2=bn(ks[3], mid),
        w3=conv_w(ks[4], cout, mid, 1, 1), bn3=bn(ks[5], cout),
        wr=conv_w(ks[6], cout, cin, 1, 1), bnr=bn(ks[7], cout),
    )


def prepare_params(raw):
    cin = raw["w1"].shape[1]
    mid = raw["w1"].shape[0]
    cout = raw["w3"].shape[0]
    cin_p, mid_p, cout_p = (_round_up(c, LANE) for c in (cin, mid, cout))

    w1, b1 = prep_1x1(raw["w1"], raw["bn1"], cin_p, mid_p)
    w2, b2 = prep_3x3(raw["w2"], raw["bn2"], mid_p, mid_p)
    w3, b3 = prep_1x1(raw["w3"], raw["bn3"], mid_p, cout_p)
    wr, br = prep_1x1(raw["wr"], raw["bnr"], cin_p, cout_p)
    # the residual BN bias is folded into the final (shared-epilogue) bias
    return dict(w1=w1, b1=b1, w2=w2, b2=b2, w3=w3, wr=wr, b3r=b3 + br)


# ------------------------------ forward pass ------------------------------- #

def im2col_3x3(x, stride, dilation):
    """x: (N,H,W,C) -> patches (N*Ho*Wo, 9*C), padding = dilation."""
    N, H, W, C = x.shape
    pad = dilation
    xp = jnp.pad(x, ((0, 0), (pad, pad), (pad, pad), (0, 0)))
    Ho = (H + 2 * pad - 2 * dilation - 1) // stride + 1
    Wo = (W + 2 * pad - 2 * dilation - 1) // stride + 1
    cols = []
    for kh in range(3):
        for kw in range(3):
            h0 = kh * dilation
            w0 = kw * dilation
            patch = xp[:, h0:h0 + stride * (Ho - 1) + 1:stride,
                          w0:w0 + stride * (Wo - 1) + 1:stride, :]
            cols.append(patch)
    patches = jnp.concatenate(cols, axis=-1)                   # (N,Ho,Wo,9*C)
    return patches.reshape(N * Ho * Wo, 9 * C), (Ho, Wo)


def bottleneck_forward(x_nchw, p, *, stride, dilation, out_channels):
    N, Cin, H, W = x_nchw.shape
    cin_p = p["w1"].shape[0]
    mid_p = p["w1"].shape[1]
    cout_p = p["w3"].shape[1]

    # NCHW -> NHWC, pad channels to lane width, cast to bf16 for the MXU
    x = jnp.transpose(x_nchw, (0, 2, 3, 1)).astype(jnp.float32)
    xpad = jnp.pad(x, ((0, 0), (0, 0), (0, 0), (0, cin_p - Cin))).astype(jnp.bfloat16)

    # block1: 1x1 conv + BN + ReLU  (BN scale folded into the weight)
    y1 = gemm_bias(xpad.reshape(N * H * W, cin_p), p["w1"], p["b1"],
                   relu=True, out_dtype=jnp.bfloat16)
    y1 = y1.reshape(N, H, W, mid_p)

    # block2: 3x3 conv (stride, dilation, padding=dilation) + BN + ReLU
    cols, (Ho, Wo) = im2col_3x3(y1, stride, dilation)
    y2 = gemm_bias(cols, p["w2"], p["b2"], relu=True, out_dtype=jnp.bfloat16)

    # block3 + residual branch + add + ReLU, fused in one Pallas kernel
    xr = xpad[:, ::stride, ::stride, :].reshape(N * Ho * Wo, cin_p)
    out = gemm_dual_bias_relu(y2, p["w3"], xr, p["wr"], p["b3r"])

    out = out.reshape(N, Ho, Wo, cout_p)[..., :out_channels]
    return jnp.transpose(out, (0, 3, 1, 2))                    # back to NCHW


# ------------------------- pure-JAX reference check ------------------------- #

def _conv_bn_ref(x, w, bn, *, stride, padding, dilation, relu, eps=1e-5):
    y = jax.lax.conv_general_dilated(
        x, w, window_strides=(stride, stride),
        padding=[(padding, padding), (padding, padding)],
        rhs_dilation=(dilation, dilation),
        dimension_numbers=("NCHW", "OIHW", "NCHW"))
    gamma, beta, mean, var = bn
    y = (y - mean[None, :, None, None]) * (
        gamma / jnp.sqrt(var + eps))[None, :, None, None] + beta[None, :, None, None]
    if relu:
        y = jnp.maximum(y, 0.0)
    return y


def bottleneck_ref(x, raw, *, stride, dilation):
    y = _conv_bn_ref(x, raw["w1"], raw["bn1"], stride=1, padding=0, dilation=1, relu=True)
    y = _conv_bn_ref(y, raw["w2"], raw["bn2"], stride=stride, padding=dilation,
                     dilation=dilation, relu=True)
    y = _conv_bn_ref(y, raw["w3"], raw["bn3"], stride=1, padding=0, dilation=1, relu=False)
    r = _conv_bn_ref(x, raw["wr"], raw["bnr"], stride=stride, padding=0, dilation=1, relu=False)
    return jnp.maximum(y + r, 0.0)


# --------------------------------- main ------------------------------------ #

if __name__ == "__main__":
    in_channels, mid_channels, out_channels = 4, 4, 8
    stride, dilation = 2, 1
    N, H, W = 2, 16, 16

    key = jax.random.PRNGKey(0)
    k_x, k_p = jax.random.split(key)
    x = jax.random.normal(k_x, (N, in_channels, H, W), jnp.float32)

    raw = init_raw_params(k_p, in_channels, mid_channels, out_channels)
    params = prepare_params(raw)

    fwd = jax.jit(functools.partial(bottleneck_forward, stride=stride,
                                    dilation=dilation, out_channels=out_channels))
    out = jax.block_until_ready(fwd(x, params))

    expected_hw = (H - 1) // stride + 1
    assert out.shape == (N, out_channels, expected_hw, expected_hw), out.shape
    assert bool(jnp.all(jnp.isfinite(out)))
    assert bool(jnp.all(out >= 0.0))  # final ReLU

    ref = bottleneck_ref(x, raw, stride=stride, dilation=dilation)
    max_err = float(jnp.max(jnp.abs(out - ref)))
    assert bool(jnp.allclose(out, ref, rtol=5e-2, atol=5e-2)), f"max_err={max_err}"

    print("KERNEL_OK")
</pallas_src>

<mosaic_0001>
module attributes {stable_mosaic.version = 11 : i64} {
  func.func @_gemm_bias_kernel(%arg0: i32, %arg1: i32, %arg2: i32, %arg3: memref<256x128xbf16, #tpu.memory_space<vmem>>, %arg4: memref<128x128xbf16, #tpu.memory_space<vmem>>, %arg5: memref<1x128xf32, #tpu.memory_space<vmem>>, %arg6: memref<256x128xbf16, #tpu.memory_space<vmem>>, %arg7: memref<256x128xf32, #tpu.memory_space<vmem>>) attributes {dimension_semantics = [#tpu.dimension_semantics<parallel>, #tpu.dimension_semantics<parallel>, #tpu.dimension_semantics<arbitrary>], iteration_bounds = array<i64: 2, 1, 1>, scalar_prefetch = 0 : i64, scratch_operands = 1 : i64, tpu.core_type = #tpu.core_type<tc>, window_params = [{transform_indices = @transform_0, window_bounds = array<i64: 256, 128>}, {transform_indices = @transform_1, window_bounds = array<i64: 128, 128>}, {transform_indices = @transform_2, window_bounds = array<i64: 1, 128>}, {transform_indices = @transform_3, window_bounds = array<i64: 256, 128>}]} {
    %c0_i32 = arith.constant 0 : i32
    %0 = arith.cmpi eq, %arg2, %c0_i32 : i32
    %1 = arith.extui %0 : i1 to i32
    %c0_i32_0 = arith.constant 0 : i32
    %2 = arith.cmpi ne, %1, %c0_i32_0 : i32
    scf.if %2 {
      %cst_10 = arith.constant 0.000000e+00 : f32
      %12 = vector.broadcast %cst_10 : f32 to vector<256x128xf32>
      %c0_11 = arith.constant 0 : index
      %c0_12 = arith.constant 0 : index
      %13 = vector.load %arg7[%c0_11, %c0_12] : memref<256x128xf32, #tpu.memory_space<vmem>>, vector<256x128xf32>
      tpu.vector_store %arg7[%c0_11, %c0_12], %12 {strides = array<i32>} : memref<256x128xf32, #tpu.memory_space<vmem>>, vector<256x128xf32>,
    } else {
    }
    %c0 = arith.constant 0 : index
    %c0_1 = arith.constant 0 : index
    %3 = vector.load %arg7[%c0, %c0_1] : memref<256x128xf32, #tpu.memory_space<vmem>>, vector<256x128xf32>
    %c0_2 = arith.constant 0 : index
    %c0_3 = arith.constant 0 : index
    %4 = vector.load %arg3[%c0_2, %c0_3] : memref<256x128xbf16, #tpu.memory_space<vmem>>, vector<256x128xbf16>
    %c0_4 = arith.constant 0 : index
    %c0_5 = arith.constant 0 : index
    %5 = vector.load %arg4[%c0_4, %c0_5] : memref<128x128xbf16, #tpu.memory_space<vmem>>, vector<128x128xbf16>
    %cst = arith.constant dense<0.000000e+00> : vector<256x128xf32>
    %6 = tpu.matmul %4, %5, %cst {dimension_numbers = #tpu.dot_dimension_numbers<[1], [0], [0], [1], [0, 0, 1, 1], [], []>} : vector<256x128xbf16>, vector<128x128xbf16>, vector<256x128xf32> -> vector<256x128xf32>
    %7 = arith.addf %3, %6 : vector<256x128xf32>
    %c0_6 = arith.constant 0 : index
    %c0_7 = arith.constant 0 : index
    %8 = vector.load %arg7[%c0_6, %c0_7] : memref<256x128xf32, #tpu.memory_space<vmem>>, vector<256x128xf32>
    tpu.vector_store %arg7[%c0_6, %c0_7], %7 {strides = array<i32>} : memref<256x128xf32, #tpu.memory_space<vmem>>, vector<256x128xf32>,
    %c0_i32_8 = arith.constant 0 : i32
    %9 = arith.cmpi eq, %arg2, %c0_i32_8 : i32
    %10 = arith.extui %9 : i1 to i32
    %c0_i32_9 = arith.constant 0 : i32
    %11 = arith.cmpi ne, %10, %c0_i32_9 : i32
    scf.if %11 {
      %c0_10 = arith.constant 0 : index
      %c0_11 = arith.constant 0 : index
      %12 = vector.load %arg7[%c0_10, %c0_11] : memref<256x128xf32, #tpu.memory_space<vmem>>, vector<256x128xf32>
      %c0_12 = arith.constant 0 : index
      %c0_13 = arith.constant 0 : index
      %13 = vector.load %arg5[%c0_12, %c0_13] : memref<1x128xf32, #tpu.memory_space<vmem>>, vector<1x128xf32>
      %14 = vector.broadcast %13 : vector<1x128xf32> to vector<256x128xf32>
      %15 = arith.addf %12, %14 : vector<256x128xf32>
      %cst_14 = arith.constant 0.000000e+00 : f32
      %16 = vector.broadcast %cst_14 : f32 to vector<256x128xf32>
      %17 = arith.maximumf %15, %16 : vector<256x128xf32>
      %18 = arith.truncf %17 : vector<256x128xf32> to vector<256x128xbf16>
      %c0_15 = arith.constant 0 : index
      %c0_16 = arith.constant 0 : index
      %19 = vector.load %arg6[%c0_15, %c0_16] : memref<256x128xbf16, #tpu.memory_space<vmem>>, vector<256x128xbf16>
      tpu.vector_store %arg6[%c0_15, %c0_16], %18 {strides = array<i32>} : memref<256x128xbf16, #tpu.memory_space<vmem>>, vector<256x128xbf16>,
    } else {
    }
    return
  }
  func.func @transform_0(%arg0: i32, %arg1: i32, %arg2: i32) -> (i32, i32) {
    %c0_i32 = arith.constant 0 : i32
    return %arg0, %arg2 : i32, i32
  }
  func.func @transform_1(%arg0: i32, %arg1: i32, %arg2: i32) -> (i32, i32) {
    %c0_i32 = arith.constant 0 : i32
    return %arg2, %arg1 : i32, i32
  }
  func.func @transform_2(%arg0: i32, %arg1: i32, %arg2: i32) -> (i32, i32) {
    %c0_i32 = arith.constant 0 : i32
    %c0_i32_0 = arith.constant 0 : i32
    return %c0_i32, %arg1 : i32, i32
  }
  func.func @transform_3(%arg0: i32, %arg1: i32, %arg2: i32) -> (i32, i32) {
    %c0_i32 = arith.constant 0 : i32
    return %arg0, %arg1 : i32, i32
  }
}

module attributes {stable_mosaic.version = 11 : i64} {
  func.func @_gemm_dual_bias_relu_kernel(%arg0: i32, %arg1: i32, %arg2: i32, %arg3: memref<128x128xbf16, #tpu.memory_space<vmem>>, %arg4: memref<128x128xbf16, #tpu.memory_space<vmem>>, %arg5: memref<128x128xbf16, #tpu.memory_space<vmem>>, %arg6: memref<128x128xbf16, #tpu.memory_space<vmem>>, %arg7: memref<1x128xf32, #tpu.memory_space<vmem>>, %arg8: memref<128x128xf32, #tpu.memory_space<vmem>>, %arg9: memref<128x128xf32, #tpu.memory_space<vmem>>) attributes {dimension_semantics = [#tpu.dimension_semantics<parallel>, #tpu.dimension_semantics<parallel>, #tpu.dimension_semantics<arbitrary>], iteration_bounds = array<i64: 1, 1, 1>, scalar_prefetch = 0 : i64, scratch_operands = 1 : i64, tpu.core_type = #tpu.core_type<tc>, window_params = [{transform_indices = @transform_0, window_bounds = array<i64: 128, 128>}, {transform_indices = @transform_1, window_bounds = array<i64: 128, 128>}, {transform_indices = @transform_2, window_bounds = array<i64: 128, 128>}, {transform_indices = @transform_3, window_bounds = array<i64: 128, 128>}, {transform_indices = @transform_4, window_bounds = array<i64: 1, 128>}, {transform_indices = @transform_5, window_bounds = array<i64: 128, 128>}]} {
    %c0_i32 = arith.constant 0 : i32
    %0 = arith.cmpi eq, %arg2, %c0_i32 : i32
    %1 = arith.extui %0 : i1 to i32
    %c0_i32_0 = arith.constant 0 : i32
    %2 = arith.cmpi ne, %1, %c0_i32_0 : i32
    scf.if %2 {
      %c0_10 = arith.constant 0 : index
      %c0_11 = arith.constant 0 : index
      %12 = vector.load %arg5[%c0_10, %c0_11] : memref<128x128xbf16, #tpu.memory_space<vmem>>, vector<128x128xbf16>
      %c0_12 = arith.constant 0 : index
      %c0_13 = arith.constant 0 : index
      %13 = vector.load %arg6[%c0_12, %c0_13] : memref<128x128xbf16, #tpu.memory_space<vmem>>, vector<128x128xbf16>
      %cst_14 = arith.constant dense<0.000000e+00> : vector<128x128xf32>
      %14 = tpu.matmul %12, %13, %cst_14 {dimension_numbers = #tpu.dot_dimension_numbers<[1], [0], [0], [1], [0, 0, 1, 1], [], []>} : vector<128x128xbf16>, vector<128x128xbf16>, vector<128x128xf32> -> vector<128x128xf32>
      %c0_15 = arith.constant 0 : index
      %c0_16 = arith.constant 0 : index
      %15 = vector.load %arg9[%c0_15, %c0_16] : memref<128x128xf32, #tpu.memory_space<vmem>>, vector<128x128xf32>
      tpu.vector_store %arg9[%c0_15, %c0_16], %14 {strides = array<i32>} : memref<128x128xf32, #tpu.memory_space<vmem>>, vector<128x128xf32>,
    } else {
    }
    %c0 = arith.constant 0 : index
    %c0_1 = arith.constant 0 : index
    %3 = vector.load %arg9[%c0, %c0_1] : memref<128x128xf32, #tpu.memory_space<vmem>>, vector<128x128xf32>
    %c0_2 = arith.constant 0 : index
    %c0_3 = arith.constant 0 : index
    %4 = vector.load %arg3[%c0_2, %c0_3] : memref<128x128xbf16, #tpu.memory_space<vmem>>, vector<128x128xbf16>
    %c0_4 = arith.constant 0 : index
    %c0_5 = arith.constant 0 : index
    %5 = vector.load %arg4[%c0_4, %c0_5] : memref<128x128xbf16, #tpu.memory_space<vmem>>, vector<128x128xbf16>
    %cst = arith.constant dense<0.000000e+00> : vector<128x128xf32>
    %6 = tpu.matmul %4, %5, %cst {dimension_numbers = #tpu.dot_dimension_numbers<[1], [0], [0], [1], [0, 0, 1, 1], [], []>} : vector<128x128xbf16>, vector<128x128xbf16>, vector<128x128xf32> -> vector<128x128xf32>
    %7 = arith.addf %3, %6 : vector<128x128xf32>
    %c0_6 = arith.constant 0 : index
    %c0_7 = arith.constant 0 : index
    %8 = vector.load %arg9[%c0_6, %c0_7] : memref<128x128xf32, #tpu.memory_space<vmem>>, vector<128x128xf32>
    tpu.vector_store %arg9[%c0_6, %c0_7], %7 {strides = array<i32>} : memref<128x128xf32, #tpu.memory_space<vmem>>, vector<128x128xf32>,
    %c0_i32_8 = arith.constant 0 : i32
    %9 = arith.cmpi eq, %arg2, %c0_i32_8 : i32
    %10 = arith.extui %9 : i1 to i32
    %c0_i32_9 = arith.constant 0 : i32
    %11 = arith.cmpi ne, %10, %c0_i32_9 : i32
    scf.if %11 {
      %c0_10 = arith.constant 0 : index
      %c0_11 = arith.constant 0 : index
      %12 = vector.load %arg9[%c0_10, %c0_11] : memref<128x128xf32, #tpu.memory_space<vmem>>, vector<128x128xf32>
      %c0_12 = arith.constant 0 : index
      %c0_13 = arith.constant 0 : index
      %13 = vector.load %arg7[%c0_12, %c0_13] : memref<1x128xf32, #tpu.memory_space<vmem>>, vector<1x128xf32>
      %14 = vector.broadcast %13 : vector<1x128xf32> to vector<128x128xf32>
      %15 = arith.addf %12, %14 : vector<128x128xf32>
      %cst_14 = arith.constant 0.000000e+00 : f32
      %16 = vector.broadcast %cst_14 : f32 to vector<128x128xf32>
      %17 = arith.maximumf %15, %16 : vector<128x128xf32>
      %c0_15 = arith.constant 0 : index
      %c0_16 = arith.constant 0 : index
      %18 = vector.load %arg8[%c0_15, %c0_16] : memref<128x128xf32, #tpu.memory_space<vmem>>, vector<128x128xf32>
      tpu.vector_store %arg8[%c0_15, %c0_16], %17 {strides = array<i32>} : memref<128x128xf32, #tpu.memory_space<vmem>>, vector<128x128xf32>,
    } else {
    }
    return
  }
  func.func @transform_0(%arg0: i32, %arg1: i32, %arg2: i32) -> (i32, i32) {
    %c0_i32 = arith.constant 0 : i32
    return %arg0, %arg2 : i32, i32
  }
  func.func @transform_1(%arg0: i32, %arg1: i32, %arg2: i32) -> (i32, i32) {
    %c0_i32 = arith.constant 0 : i32
    return %arg2, %arg1 : i32, i32
  }
  func.func @transform_2(%arg0: i32, %arg1: i32, %arg2: i32) -> (i32, i32) {
    %c0_i32 = arith.constant 0 : i32
    %c0_i32_0 = arith.constant 0 : i32
    return %arg0, %c0_i32 : i32, i32
  }
  func.func @transform_3(%arg0: i32, %arg1: i32, %arg2: i32) -> (i32, i32) {
    %c0_i32 = arith.constant 0 : i32
    %c0_i32_0 = arith.constant 0 : i32
    return %c0_i32, %arg1 : i32, i32
  }
  func.func @transform_4(%arg0: i32, %arg1: i32, %arg2: i32) -> (i32, i32) {
    %c0_i32 = arith.constant 0 : i32
    %c0_i32_0 = arith.constant 0 : i32
    return %c0_i32, %arg1 : i32, i32
  }
  func.func @transform_5(%arg0: i32, %arg1: i32, %arg2: i32) -> (i32, i32) {
    %c0_i32 = arith.constant 0 : i32
    return %arg0, %arg1 : i32, i32
  }
}

module attributes {stable_mosaic.version = 11 : i64} {
  func.func @_gemm_bias_kernel(%arg0: i32, %arg1: i32, %arg2: i32, %arg3: memref<128x128xbf16, #tpu.memory_space<vmem>>, %arg4: memref<128x128xbf16, #tpu.memory_space<vmem>>, %arg5: memref<1x128xf32, #tpu.memory_space<vmem>>, %arg6: memref<128x128xbf16, #tpu.memory_space<vmem>>, %arg7: memref<128x128xf32, #tpu.memory_space<vmem>>) attributes {dimension_semantics = [#tpu.dimension_semantics<parallel>, #tpu.dimension_semantics<parallel>, #tpu.dimension_semantics<arbitrary>], iteration_bounds = array<i64: 1, 1, 9>, scalar_prefetch = 0 : i64, scratch_operands = 1 : i64, tpu.core_type = #tpu.core_type<tc>, window_params = [{transform_indices = @transform_0, window_bounds = array<i64: 128, 128>}, {transform_indices = @transform_1, window_bounds = array<i64: 128, 128>}, {transform_indices = @transform_2, window_bounds = array<i64: 1, 128>}, {transform_indices = @transform_3, window_bounds = array<i64: 128, 128>}]} {
    %c0_i32 = arith.constant 0 : i32
    %0 = arith.cmpi eq, %arg2, %c0_i32 : i32
    %1 = arith.extui %0 : i1 to i32
    %c0_i32_0 = arith.constant 0 : i32
    %2 = arith.cmpi ne, %1, %c0_i32_0 : i32
    scf.if %2 {
      %cst_9 = arith.constant 0.000000e+00 : f32
      %12 = vector.broadcast %cst_9 : f32 to vector<128x128xf32>
      %c0_10 = arith.constant 0 : index
      %c0_11 = arith.constant 0 : index
      %13 = vector.load %arg7[%c0_10, %c0_11] : memref<128x128xf32, #tpu.memory_space<vmem>>, vector<128x128xf32>
      tpu.vector_store %arg7[%c0_10, %c0_11], %12 {strides = array<i32>} : memref<128x128xf32, #tpu.memory_space<vmem>>, vector<128x128xf32>,
    } else {
    }
    %c0 = arith.constant 0 : index
    %c0_1 = arith.constant 0 : index
    %3 = vector.load %arg7[%c0, %c0_1] : memref<128x128xf32, #tpu.memory_space<vmem>>, vector<128x128xf32>
    %c0_2 = arith.constant 0 : index
    %c0_3 = arith.constant 0 : index
    %4 = vector.load %arg3[%c0_2, %c0_3] : memref<128x128xbf16, #tpu.memory_space<vmem>>, vector<128x128xbf16>
    %c0_4 = arith.constant 0 : index
    %c0_5 = arith.constant 0 : index
    %5 = vector.load %arg4[%c0_4, %c0_5] : memref<128x128xbf16, #tpu.memory_space<vmem>>, vector<128x128xbf16>
    %cst = arith.constant dense<0.000000e+00> : vector<128x128xf32>
    %6 = tpu.matmul %4, %5, %cst {dimension_numbers = #tpu.dot_dimension_numbers<[1], [0], [0], [1], [0, 0, 1, 1], [], []>} : vector<128x128xbf16>, vector<128x128xbf16>, vector<128x128xf32> -> vector<128x128xf32>
    %7 = arith.addf %3, %6 : vector<128x128xf32>
    %c0_6 = arith.constant 0 : index
    %c0_7 = arith.constant 0 : index
    %8 = vector.load %arg7[%c0_6, %c0_7] : memref<128x128xf32, #tpu.memory_space<vmem>>, vector<128x128xf32>
    tpu.vector_store %arg7[%c0_6, %c0_7], %7 {strides = array<i32>} : memref<128x128xf32, #tpu.memory_space<vmem>>, vector<128x128xf32>,
    %c8_i32 = arith.constant 8 : i32
    %9 = arith.cmpi eq, %arg2, %c8_i32 : i32
    %10 = arith.extui %9 : i1 to i32
    %c0_i32_8 = arith.constant 0 : i32
    %11 = arith.cmpi ne, %10, %c0_i32_8 : i32
    scf.if %11 {
      %c0_9 = arith.constant 0 : index
      %c0_10 = arith.constant 0 : index
      %12 = vector.load %arg7[%c0_9, %c0_10] : memref<128x128xf32, #tpu.memory_space<vmem>>, vector<128x128xf32>
      %c0_11 = arith.constant 0 : index
      %c0_12 = arith.constant 0 : index
      %13 = vector.load %arg5[%c0_11, %c0_12] : memref<1x128xf32, #tpu.memory_space<vmem>>, vector<1x128xf32>
      %14 = vector.broadcast %13 : vector<1x128xf32> to vector<128x128xf32>
      %15 = arith.addf %12, %14 : vector<128x128xf32>
      %cst_13 = arith.constant 0.000000e+00 : f32
      %16 = vector.broadcast %cst_13 : f32 to vector<128x128xf32>
      %17 = arith.maximumf %15, %16 : vector<128x128xf32>
      %18 = arith.truncf %17 : vector<128x128xf32> to vector<128x128xbf16>
      %c0_14 = arith.constant 0 : index
      %c0_15 = arith.constant 0 : index
      %19 = vector.load %arg6[%c0_14, %c0_15] : memref<128x128xbf16, #tpu.memory_space<vmem>>, vector<128x128xbf16>
      tpu.vector_store %arg6[%c0_14, %c0_15], %18 {strides = array<i32>} : memref<128x128xbf16, #tpu.memory_space<vmem>>, vector<128x128xbf16>,
    } else {
    }
    return
  }
  func.func @transform_0(%arg0: i32, %arg1: i32, %arg2: i32) -> (i32, i32) {
    %c0_i32 = arith.constant 0 : i32
    return %arg0, %arg2 : i32, i32
  }
  func.func @transform_1(%arg0: i32, %arg1: i32, %arg2: i32) -> (i32, i32) {
    %c0_i32 = arith.constant 0 : i32
    return %arg2, %arg1 : i32, i32
  }
  func.func @transform_2(%arg0: i32, %arg1: i32, %arg2: i32) -> (i32, i32) {
    %c0_i32 = arith.constant 0 : i32
    %c0_i32_0 = arith.constant 0 : i32
    return %c0_i32, %arg1 : i32, i32
  }
  func.func @transform_3(%arg0: i32, %arg1: i32, %arg2: i32) -> (i32, i32) {
    %c0_i32 = arith.constant 0 : i32
    return %arg0, %arg1 : i32, i32
  }
}

</mosaic_0001>

<llo_original>
// kernel: bottleneck_forward.3
$region0: #{bottleneck_forward.3}
  #allocation0 [shape = 'u32[]', space=smem, size = 0x4, offset = 0x4, fixed_abs, tag = 'smem constant byte address 0x4 - core index']
  #allocation1 [shape = 'u32[144,128]{1,0:T(1,128)}', space=vmem, size = 0x12000, scoped, tag = 'internal scratch']
  #allocation2 [shape = 'f32[256,128]{1,0:T(8,128)}', space=vmem, size = 0x20000, scoped, tag = 'scratch operand']
  %s0 = inlined_call_operand.vmem [shape: bf16[512,128], index: 0, kind: input, shape index: {}]
  %s1 = inlined_call_operand.vmem [shape: bf16[128,128], index: 1, kind: input, shape index: {}]
  %s2 = inlined_call_operand.vmem [shape: f32[1,128], index: 2, kind: input, shape index: {}]
  %s3 = inlined_call_operand.vmem [shape: bf16[512,128], index: 3, kind: output, shape index: {}]
  %s4 = sld [smem:[#allocation0]]
  $region53: #{bottleneck_forward.3} parent=0
    _
  %s6 = ssub.s32 1, %s4
  %s7 = scalar_select 0, %s6, %s4
  loop: start=0, step=1, limit=4
  $region2: #{bottleneck_forward.3} parent=0 // loop_pre_header
    _
  $region3: #{bottleneck_forward.3} parent=0 // loop_header
    %s9 = sphi 0, %s13
    %p10 = scmp.ge.s32.totalorder %s9, 4
    %s16 = sphi 0, %s35
    %s17 = sphi 0, %s31
    %s18 = sphi 0, %s27
    %s19 = sphi 0, %s16
    %s20 = sphi 0, %s17
    %s21 = sphi 0, %s18
    %s22 = sphi 0, %s19
    %s23 = sphi 0, %s20
    %s24 = sphi 0, %s21
    %s40 = sphi 0, %s42
    %s43 = sphi 0, %s40
    %s44 = sphi 0, %s43
    %s60 = sphi 0, %s44
    %s68 = sphi 0, %s70
    %s71 = sphi 0, %s68
    %s72 = sphi 0, %s71
    %s88 = sphi 0, %s72
    %s94 = sphi 0, %s96
    %s97 = sphi 0, %s94
    %s98 = sphi 0, %s97
    %s114 = sphi 0, %s98
    %s122 = sphi 0, %s124
    %s125 = sphi 0, %s122
    %s126 = sphi 0, %s125
    %s142 = sphi 0, %s126
  $region4: #{bottleneck_forward.3} parent=0 // loop_header_branch
    %12 = sbr.rel (%p10) target = $region8
  $region5: #{bottleneck_forward.3} parent=0 // loop_body
    %s14 = ssub.s32 %s9, 1
    %s15 = ssub.s32 %s9, 2
    %s25 = sadd.s32 1, %s18
    %p26 = scmp.ge.s32.totalorder %s25, 1
    %s27 = scalar_select %p26, 0, %s25
    %s28 = sadd.s32 1, %s17
    %s29 = scalar_select %p26, %s28, %s17
    %p30 = scmp.ge.s32.totalorder %s29, 1
    %s31 = scalar_select %p30, 0, %s29
    %s32 = sadd.s32 1, %s16
    %s33 = scalar_select %p30, %s32, %s16
    %p34 = scmp.ge.s32.totalorder %s33, 2
    %s35 = scalar_select %p34, 0, %s33
    %s36 = ssub.s32 %s16, %s35
    %s37 = ssub.s32 %s18, %s27
    %s38 = sor.u32 %s36, %s37
    %p39 = scmp.eq.s32.totalorder %s38, 0
    %s41 = sadd.s32 %s40, 1
    %s42 = scalar_select %p39, %s40, %s41
    %p45 = pneg %p39
    %p46 = scmp.eq.s32.totalorder %s9, 1
    %p47 = por %p45, %p46
    %p48 = scmp.ne.s32.totalorder %s40, %s43
    %p49 = scmp.eq.s32.totalorder %s9, 0
    %p50 = por %p48, %p49
    %p51 = scmp.ne.s32.totalorder %s40, %s43
    %p52 = scmp.eq.s32.totalorder %s14, 1
    %p53 = por %p51, %p52
    %p54 = scmp.ne.s32.totalorder %s43, %s44
    %p55 = scmp.eq.s32.totalorder %s14, 0
    %p56 = por %p54, %p55
    %p57 = scmp.ne.s32.totalorder %s43, %s44
    %p58 = scmp.eq.s32.totalorder %s15, 1
    %p59 = por %p57, %p58
    %p61 = scmp.ne.s32.totalorder %s44, %s60
    %p62 = scmp.eq.s32.totalorder %s15, 0
    %p63 = por %p61, %p62
    %s64 = ssub.s32 %s18, %s27
    %s65 = ssub.s32 %s17, %s31
    %s66 = sor.u32 %s64, %s65
    %p67 = scmp.eq.s32.totalorder %s66, 0
    %s69 = sadd.s32 %s68, 1
    %s70 = scalar_select %p67, %s68, %s69
    %p73 = pneg %p67
    %p74 = scmp.eq.s32.totalorder %s9, 1
    %p75 = por %p73, %p74
    %p76 = scmp.ne.s32.totalorder %s68, %s71
    %p77 = scmp.eq.s32.totalorder %s9, 0
    %p78 = por %p76, %p77
    %p79 = scmp.ne.s32.totalorder %s68, %s71
    %p80 = scmp.eq.s32.totalorder %s14, 1
    %p81 = por %p79, %p80
    %p82 = scmp.ne.s32.totalorder %s71, %s72
    %p83 = scmp.eq.s32.totalorder %s14, 0
    %p84 = por %p82, %p83
    %p85 = scmp.ne.s32.totalorder %s71, %s72
    %p86 = scmp.eq.s32.totalorder %s15, 1
    %p87 = por %p85, %p86
    %p89 = scmp.ne.s32.totalorder %s72, %s88
    %p90 = scmp.eq.s32.totalorder %s15, 0
    %p91 = por %p89, %p90
    %s92 = ssub.s32 %s17, %s31
    %p93 = scmp.eq.s32.totalorder %s92, 0
    %s95 = sadd.s32 %s94, 1
    %s96 = scalar_select %p93, %s94, %s95
    %p99 = pneg %p93
    %p100 = scmp.eq.s32.totalorder %s9, 1
    %p101 = por %p99, %p100
    %p102 = scmp.ne.s32.totalorder %s94, %s97
    %p103 = scmp.eq.s32.totalorder %s9, 0
    %p104 = por %p102, %p103
    %p105 = scmp.ne.s32.totalorder %s94, %s97
    %p106 = scmp.eq.s32.totalorder %s14, 1
    %p107 = por %p105, %p106
    %p108 = scmp.ne.s32.totalorder %s97, %s98
    %p109 = scmp.eq.s32.totalorder %s14, 0
    %p110 = por %p108, %p109
    %p111 = scmp.ne.s32.totalorder %s97, %s98
    %p112 = scmp.eq.s32.totalorder %s15, 1
    %p113 = por %p111, %p112
    %p115 = scmp.ne.s32.totalorder %s98, %s114
    %p116 = scmp.eq.s32.totalorder %s15, 0
    %p117 = por %p115, %p116
    %s118 = ssub.s32 %s16, %s35
    %s119 = ssub.s32 %s17, %s31
    %s120 = sor.u32 %s118, %s119
    %p121 = scmp.eq.s32.totalorder %s120, 0
    %s123 = sadd.s32 %s122, 1
    %s124 = scalar_select %p121, %s122, %s123
    %p127 = pneg %p121
    %p128 = scmp.eq.s32.totalorder %s9, 1
    %p129 = por %p127, %p128
    %p130 = scmp.ne.s32.totalorder %s122, %s125
    %p131 = scmp.eq.s32.totalorder %s9, 0
    %p132 = por %p130, %p131
    %p133 = scmp.ne.s32.totalorder %s122, %s125
    %p134 = scmp.eq.s32.totalorder %s14, 1
    %p135 = por %p133, %p134
    %p136 = scmp.ne.s32.totalorder %s125, %s126
    %p137 = scmp.eq.s32.totalorder %s14, 0
    %p138 = por %p136, %p137
    %p139 = scmp.ne.s32.totalorder %s125, %s126
    %p140 = scmp.eq.s32.totalorder %s15, 1
    %p141 = por %p139, %p140
    %p143 = scmp.ne.s32.totalorder %s126, %s142
    %p144 = scmp.eq.s32.totalorder %s15, 0
    %p145 = por %p143, %p144
    %p146 = scmp.le.s32.totalorder 1, %s9
    %p147 = scmp.lt.s32.totalorder %s9, 3
    %p148 = pnand %p146, %p147
    %p149 = pneg %p148
    // Predicated region
    $region9: #{bottleneck_forward.3} parent=5 // pred_check
      _
    $region10: #{bottleneck_forward.3} parent=5 // pred_check_branch
      %151 = sbr.rel (%p148) target = $region12
    $region11: #{bottleneck_forward.3} parent=5 // pred_region
      %s152 = ssub.s32 %s9, 1
      // Predicated region
      $region13: #{bottleneck_forward.3} parent=11 // pred_check
        %p153 = pneg %p84
      $region14: #{bottleneck_forward.3} parent=11 // pred_check_branch
        %155 = sbr.rel (%p153) target = $region16
      $region15: #{bottleneck_forward.3} parent=11 // pred_region
        %s156 = smul.u32 16, %s21
        %p157 = scmp.lt.s32.totalorder %s156, 15
        %s158 = scalar_select %p157, %s156, 15
        %p159 = scmp.lt.s32.totalorder %s20, 0
        %s160 = scalar_select %p159, %s20, 0
        %s161 = sadd.s32 %s160, %s158
        %s162 = smul.addr %s161, 4
        %s163 = scalar_lea.vmem %s1, %s162
        %s164 = smul.u32 16, %s21
      $region16: #{bottleneck_forward.3} parent=11 // pred_fallthru
        _
      // Predicated region
      $region17: #{bottleneck_forward.3} parent=11 // pred_check
        %p165 = pneg %p110
      $region18: #{bottleneck_forward.3} parent=11 // pred_check_branch
        %167 = sbr.rel (%p165) target = $region20
      $region19: #{bottleneck_forward.3} parent=11 // pred_region
        %p168 = scmp.lt.s32.totalorder %s20, 0
        %s169 = scalar_select %p168, %s20, 0
        %s170 = scalar_lea.vmem %s2, %s169
      $region20: #{bottleneck_forward.3} parent=11 // pred_fallthru
        _
    $region12: #{bottleneck_forward.3} parent=5 // pred_fallthru
      _
    %p171 = scmp.lt.s32.totalorder %s9, 2
    // Predicated region
    $region21: #{bottleneck_forward.3} parent=5 // pred_check
      %p172 = pneg %p171
    $region22: #{bottleneck_forward.3} parent=5 // pred_check_branch
      %174 = sbr.rel (%p172) target = $region24
    $region23: #{bottleneck_forward.3} parent=5 // pred_region
      // Predicated region
      $region25: #{bottleneck_forward.3} parent=23 // pred_check
        %p175 = pneg %p50
      $region26: #{bottleneck_forward.3} parent=23 // pred_check_branch
        %177 = sbr.rel (%p175) target = $region28
      $region27: #{bottleneck_forward.3} parent=23 // pred_region
        %s178 = smul.u32 32, %s16
        %p179 = scmp.lt.s32.totalorder %s178, 63
        %s180 = scalar_select %p179, %s178, 63
        %p181 = scmp.lt.s32.totalorder %s18, 0
        %s182 = scalar_select %p181, %s18, 0
        %s183 = sadd.s32 %s182, %s180
        %s184 = smul.addr %s183, 4
        %s185 = scalar_lea.vmem %s0, %s184
        %s186 = smul.u32 32, %s16
      $region28: #{bottleneck_forward.3} parent=23 // pred_fallthru
        _
    $region24: #{bottleneck_forward.3} parent=5 // pred_fallthru
      _
    %p187 = scmp.le.s32.totalorder 1, %s9
    %p188 = scmp.lt.s32.totalorder %s9, 3
    %p189 = pnand %p187, %p188
    %p190 = pneg %p189
    // Predicated region
    $region29: #{bottleneck_forward.3} parent=5 // pred_check
      _
    $region30: #{bottleneck_forward.3} parent=5 // pred_check_branch
      %192 = sbr.rel (%p189) target = $region32
    $region31: #{bottleneck_forward.3} parent=5 // pred_region
      %s193 = ssub.s32 %s9, 1
      %s194 = smul.u32 32, %s19
      %p195 = scmp.lt.s32.totalorder %s194, 63
      %s196 = scalar_select %p195, %s194, 63
      %p197 = scmp.lt.s32.totalorder %s21, 0
      %s198 = scalar_select %p197, %s21, 0
      %s199 = sadd.s32 %s198, %s196
      %s200 = smul.addr %s199, 4
      %s201 = scalar_lea.vmem %s0, %s200
      %p202 = pneg %p56
      %p203 = pneg %p53
      %s204 = smul.u32 16, %s21
      %p205 = scmp.lt.s32.totalorder %s204, 15
      %s206 = scalar_select %p205, %s204, 15
      %p207 = scmp.lt.s32.totalorder %s20, 0
      %s208 = scalar_select %p207, %s20, 0
      %s209 = sadd.s32 %s208, %s206
      %s210 = smul.addr %s209, 4
      %s211 = scalar_lea.vmem %s1, %s210
      %p212 = pneg %p84
      %p213 = pneg %p81
      %p214 = scmp.lt.s32.totalorder %s20, 0
      %s215 = scalar_select %p214, %s20, 0
      %s216 = scalar_lea.vmem %s2, %s215
      %p217 = pneg %p110
      %p218 = pneg %p107
      %p219 = pneg %p138
      %p220 = pneg %p135
      %s221 = smul.u32 32, %s19
      %p222 = scmp.lt.s32.totalorder %s221, 63
      %s223 = scalar_select %p222, %s221, 63
      %p224 = scmp.lt.s32.totalorder %s20, 0
      %s225 = scalar_select %p224, %s20, 0
      %s226 = sadd.s32 %s225, %s223
      %s227 = smul.addr %s226, 4
      %s228 = scalar_lea.vmem %s3, %s227
      %s229 = smul.u32 32, %s19
      %p230 = scmp.lt.s32.totalorder %s229, 63
      %s231 = scalar_select %p230, %s229, 63
      %p232 = scmp.lt.s32.totalorder %s21, 0
      %s233 = scalar_select %p232, %s21, 0
      %s234 = sadd.s32 %s233, %s231
      %s235 = smul.addr %s234, 4
      %s236 = scalar_lea.vmem %s0, %s235
      %s237 = smul.u32 32, %s19
      %s238 = smul.u32 16, %s21
      %p239 = scmp.lt.s32.totalorder %s238, 15
      %s240 = scalar_select %p239, %s238, 15
      %p241 = scmp.lt.s32.totalorder %s20, 0
      %s242 = scalar_select %p241, %s20, 0
      %s243 = sadd.s32 %s242, %s240
      %s244 = smul.addr %s243, 4
      %s245 = scalar_lea.vmem %s1, %s244
      %s246 = smul.u32 16, %s21
      %p247 = scmp.lt.s32.totalorder %s20, 0
      %s248 = scalar_select %p247, %s20, 0
      %s249 = scalar_lea.vmem %s2, %s248
      %s250 = smul.u32 32, %s19
      %p251 = scmp.lt.s32.totalorder %s250, 63
      %s252 = scalar_select %p251, %s250, 63
      %p253 = scmp.lt.s32.totalorder %s20, 0
      %s254 = scalar_select %p253, %s20, 0
      %s255 = sadd.s32 %s254, %s252
      %s256 = smul.addr %s255, 4
      %s257 = scalar_lea.vmem %s3, %s256
      %s258 = smul.u32 32, %s19
      %p260 = scmp.eq.s32.totalorder %s21, 0
      // Predicated region
      $region33: #{bottleneck_forward.3} parent=31 // pred_check
        %p261 = pneg %p260
      $region34: #{bottleneck_forward.3} parent=31 // pred_check_branch
        %263 = sbr.rel (%p261) target = $region36
      $region35: #{bottleneck_forward.3} parent=31 // pred_region
        %264 = vst [vmem:[#allocation2] sm:$0xff] 0.0
        %265 = vst [vmem:[#allocation2 + $0x8] sm:$0xff] 0.0
        %266 = vst [vmem:[#allocation2 + $0x10] sm:$0xff] 0.0
        %267 = vst [vmem:[#allocation2 + $0x18] sm:$0xff] 0.0
        %268 = vst [vmem:[#allocation2 + $0x20] sm:$0xff] 0.0
        %269 = vst [vmem:[#allocation2 + $0x28] sm:$0xff] 0.0
        %270 = vst [vmem:[#allocation2 + $0x30] sm:$0xff] 0.0
        %271 = vst [vmem:[#allocation2 + $0x38] sm:$0xff] 0.0
        %272 = vst [vmem:[#allocation2 + $0x40] sm:$0xff] 0.0
        %273 = vst [vmem:[#allocation2 + $0x48] sm:$0xff] 0.0
        %274 = vst [vmem:[#allocation2 + $0x50] sm:$0xff] 0.0
        %275 = vst [vmem:[#allocation2 + $0x58] sm:$0xff] 0.0
        %276 = vst [vmem:[#allocation2 + $0x60] sm:$0xff] 0.0
        %277 = vst [vmem:[#allocation2 + $0x68] sm:$0xff] 0.0
        %278 = vst [vmem:[#allocation2 + $0x70] sm:$0xff] 0.0
        %279 = vst [vmem:[#allocation2 + $0x78] sm:$0xff] 0.0
        %280 = vst [vmem:[#allocation2 + $0x80] sm:$0xff] 0.0
        %281 = vst [vmem:[#allocation2 + $0x88] sm:$0xff] 0.0
        %282 = vst [vmem:[#allocation2 + $0x90] sm:$0xff] 0.0
        %283 = vst [vmem:[#allocation2 + $0x98] sm:$0xff] 0.0
        %284 = vst [vmem:[#allocation2 + $0xa0] sm:$0xff] 0.0
        %285 = vst [vmem:[#allocation2 + $0xa8] sm:$0xff] 0.0
        %286 = vst [vmem:[#allocation2 + $0xb0] sm:$0xff] 0.0
        %287 = vst [vmem:[#allocation2 + $0xb8] sm:$0xff] 0.0
        %288 = vst [vmem:[#allocation2 + $0xc0] sm:$0xff] 0.0
        %289 = vst [vmem:[#allocation2 + $0xc8] sm:$0xff] 0.0
        %290 = vst [vmem:[#allocation2 + $0xd0] sm:$0xff] 0.0
        %291 = vst [vmem:[#allocation2 + $0xd8] sm:$0xff] 0.0
        %292 = vst [vmem:[#allocation2 + $0xe0] sm:$0xff] 0.0
        %293 = vst [vmem:[#allocation2 + $0xe8] sm:$0xff] 0.0
        %294 = vst [vmem:[#allocation2 + $0xf0] sm:$0xff] 0.0
        %295 = vst [vmem:[#allocation2 + $0xf8] sm:$0xff] 0.0
      $region36: #{bottleneck_forward.3} parent=31 // pred_fallthru
        _
      %v296 = vld [vmem:[#allocation2] sm:$0xff]
      %v297 = vld [vmem:[#allocation2 + $0x8] sm:$0xff]
      %v298 = vld [vmem:[#allocation2 + $0x10] sm:$0xff]
      %v299 = vld [vmem:[#allocation2 + $0x18] sm:$0xff]
      %v300 = vld [vmem:[#allocation2 + $0x20] sm:$0xff]
      %v301 = vld [vmem:[#allocation2 + $0x28] sm:$0xff]
      %v302 = vld [vmem:[#allocation2 + $0x30] sm:$0xff]
      %v303 = vld [vmem:[#allocation2 + $0x38] sm:$0xff]
      %v304 = vld [vmem:[#allocation2 + $0x40] sm:$0xff]
      %v305 = vld [vmem:[#allocation2 + $0x48] sm:$0xff]
      %v306 = vld [vmem:[#allocation2 + $0x50] sm:$0xff]
      %v307 = vld [vmem:[#allocation2 + $0x58] sm:$0xff]
      %v308 = vld [vmem:[#allocation2 + $0x60] sm:$0xff]
      %v309 = vld [vmem:[#allocation2 + $0x68] sm:$0xff]
      %v310 = vld [vmem:[#allocation2 + $0x70] sm:$0xff]
      %v311 = vld [vmem:[#allocation2 + $0x78] sm:$0xff]
      %v312 = vld [vmem:[#allocation2 + $0x80] sm:$0xff]
      %v313 = vld [vmem:[#allocation2 + $0x88] sm:$0xff]
      %v314 = vld [vmem:[#allocation2 + $0x90] sm:$0xff]
      %v315 = vld [vmem:[#allocation2 + $0x98] sm:$0xff]
      %v316 = vld [vmem:[#allocation2 + $0xa0] sm:$0xff]
      %v317 = vld [vmem:[#allocation2 + $0xa8] sm:$0xff]
      %v318 = vld [vmem:[#allocation2 + $0xb0] sm:$0xff]
      %v319 = vld [vmem:[#allocation2 + $0xb8] sm:$0xff]
      %v320 = vld [vmem:[#allocation2 + $0xc0] sm:$0xff]
      %v321 = vld [vmem:[#allocation2 + $0xc8] sm:$0xff]
      %v322 = vld [vmem:[#allocation2 + $0xd0] sm:$0xff]
      %v323 = vld [vmem:[#allocation2 + $0xd8] sm:$0xff]
      %v324 = vld [vmem:[#allocation2 + $0xe0] sm:$0xff]
      %v325 = vld [vmem:[#allocation2 + $0xe8] sm:$0xff]
      %v326 = vld [vmem:[#allocation2 + $0xf0] sm:$0xff]
      %v327 = vld [vmem:[#allocation2 + $0xf8] sm:$0xff]
      %v328 = vld [vmem:[%s236] sm:$0xf]
      %v329 = vld [vmem:[%s236 + $0x4] sm:$0xf]
      %v330 = vld [vmem:[%s236 + $0x8] sm:$0xf]
      %v331 = vld [vmem:[%s236 + $0xc] sm:$0xf]
      %v332 = vld [vmem:[%s236 + $0x10] sm:$0xf]
      %v333 = vld [vmem:[%s236 + $0x14] sm:$0xf]
      %v334 = vld [vmem:[%s236 + $0x18] sm:$0xf]
      %v335 = vld [vmem:[%s236 + $0x1c] sm:$0xf]
      %v336 = vld [vmem:[%s236 + $0x20] sm:$0xf]
      %v337 = vld [vmem:[%s236 + $0x24] sm:$0xf]
      %v338 = vld [vmem:[%s236 + $0x28] sm:$0xf]
      %v339 = vld [vmem:[%s236 + $0x2c] sm:$0xf]
      %v340 = vld [vmem:[%s236 + $0x30] sm:$0xf]
      %v341 = vld [vmem:[%s236 + $0x34] sm:$0xf]
      %v342 = vld [vmem:[%s236 + $0x38] sm:$0xf]
      %v343 = vld [vmem:[%s236 + $0x3c] sm:$0xf]
      %v344 = vld [vmem:[%s236 + $0x40] sm:$0xf]
      %v345 = vld [vmem:[%s236 + $0x44] sm:$0xf]
      %v346 = vld [vmem:[%s236 + $0x48] sm:$0xf]
      %v347 = vld [vmem:[%s236 + $0x4c] sm:$0xf]
      %v348 = vld [vmem:[%s236 + $0x50] sm:$0xf]
      %v349 = vld [vmem:[%s236 + $0x54] sm:$0xf]
      %v350 = vld [vmem:[%s236 + $0x58] sm:$0xf]
      %v351 = vld [vmem:[%s236 + $0x5c] sm:$0xf]
      %v352 = vld [vmem:[%s236 + $0x60] sm:$0xf]
      %v353 = vld [vmem:[%s236 + $0x64] sm:$0xf]
      %v354 = vld [vmem:[%s236 + $0x68] sm:$0xf]
      %v355 = vld [vmem:[%s236 + $0x6c] sm:$0xf]
      %v356 = vld [vmem:[%s236 + $0x70] sm:$0xf]
      %v357 = vld [vmem:[%s236 + $0x74] sm:$0xf]
      %v358 = vld [vmem:[%s236 + $0x78] sm:$0xf]
      %v359 = vld [vmem:[%s236 + $0x7c] sm:$0xf]
      %v360 = vld [vmem:[%s245] sm:$0xf]
      %v361 = vld [vmem:[%s245 + $0x4] sm:$0xf]
      %v362 = vld [vmem:[%s245 + $0x8] sm:$0xf]
      %v363 = vld [vmem:[%s245 + $0xc] sm:$0xf]
      %v364 = vld [vmem:[%s245 + $0x10] sm:$0xf]
      %v365 = vld [vmem:[%s245 + $0x14] sm:$0xf]
      %v366 = vld [vmem:[%s245 + $0x18] sm:$0xf]
      %v367 = vld [vmem:[%s245 + $0x1c] sm:$0xf]
      %v368 = vld [vmem:[%s245 + $0x20] sm:$0xf]
      %v369 = vld [vmem:[%s245 + $0x24] sm:$0xf]
      %v370 = vld [vmem:[%s245 + $0x28] sm:$0xf]
      %v371 = vld [vmem:[%s245 + $0x2c] sm:$0xf]
      %v372 = vld [vmem:[%s245 + $0x30] sm:$0xf]
      %v373 = vld [vmem:[%s245 + $0x34] sm:$0xf]
      %v374 = vld [vmem:[%s245 + $0x38] sm:$0xf]
      %v375 = vld [vmem:[%s245 + $0x3c] sm:$0xf]
      %v408 = vunpack.c.l.b16 %v328
      %v409 = vunpack.c.l.b16 %v329
      %v410 = vunpack.c.l.b16 %v330
      %v411 = vunpack.c.l.b16 %v331
      %v412 = vunpack.c.l.b16 %v332
      %v413 = vunpack.c.l.b16 %v333
      %v414 = vunpack.c.l.b16 %v334
      %v415 = vunpack.c.l.b16 %v335
      %v416 = vunpack.c.l.b16 %v336
      %v417 = vunpack.c.l.b16 %v337
      %v418 = vunpack.c.l.b16 %v338
      %v419 = vunpack.c.l.b16 %v339
      %v420 = vunpack.c.l.b16 %v340
      %v421 = vunpack.c.l.b16 %v341
      %v422 = vunpack.c.l.b16 %v342
      %v423 = vunpack.c.l.b16 %v343
      %v424 = vunpack.c.l.b16 %v344
      %v425 = vunpack.c.l.b16 %v345
      %v426 = vunpack.c.l.b16 %v346
      %v427 = vunpack.c.l.b16 %v347
      %v428 = vunpack.c.l.b16 %v348
      %v429 = vunpack.c.l.b16 %v349
      %v430 = vunpack.c.l.b16 %v350
      %v431 = vunpack.c.l.b16 %v351
      %v432 = vunpack.c.l.b16 %v352
      %v433 = vunpack.c.l.b16 %v353
      %v434 = vunpack.c.l.b16 %v354
      %v435 = vunpack.c.l.b16 %v355
      %v436 = vunpack.c.l.b16 %v356
      %v437 = vunpack.c.l.b16 %v357
      %v438 = vunpack.c.l.b16 %v358
      %v439 = vunpack.c.l.b16 %v359
      %v440 = vpack.c.b16 %v409, %v408
      %v441 = vpack.c.b16 %v411, %v410
      %v442 = vpack.c.b16 %v413, %v412
      %v443 = vpack.c.b16 %v415, %v414
      %v444 = vpack.c.b16 %v417, %v416
      %v445 = vpack.c.b16 %v419, %v418
      %v446 = vpack.c.b16 %v421, %v420
      %v447 = vpack.c.b16 %v423, %v422
      %v448 = vpack.c.b16 %v425, %v424
      %v449 = vpack.c.b16 %v427, %v426
      %v450 = vpack.c.b16 %v429, %v428
      %v451 = vpack.c.b16 %v431, %v430
      %v452 = vpack.c.b16 %v433, %v432
      %v453 = vpack.c.b16 %v435, %v434
      %v454 = vpack.c.b16 %v437, %v436
      %v455 = vpack.c.b16 %v439, %v438
      %v488 = vunpack.c.l.b16 %v360
      %v489 = vunpack.c.l.b16 %v361
      %v490 = vunpack.c.l.b16 %v362
      %v491 = vunpack.c.l.b16 %v363
      %v492 = vunpack.c.l.b16 %v364
      %v493 = vunpack.c.l.b16 %v365
      %v494 = vunpack.c.l.b16 %v366
      %v495 = vunpack.c.l.b16 %v367
      %v496 = vunpack.c.l.b16 %v368
      %v497 = vunpack.c.l.b16 %v369
      %v498 = vunpack.c.l.b16 %v370
      %v499 = vunpack.c.l.b16 %v371
      %v500 = vunpack.c.l.b16 %v372
      %v501 = vunpack.c.l.b16 %v373
      %v502 = vunpack.c.l.b16 %v374
      %v503 = vunpack.c.l.b16 %v375
      %v504 = vpack.c.b16 %v489, %v488
      %v505 = vpack.c.b16 %v491, %v490
      %v506 = vpack.c.b16 %v493, %v492
      %v507 = vpack.c.b16 %v495, %v494
      %v508 = vpack.c.b16 %v497, %v496
      %v509 = vpack.c.b16 %v499, %v498
      %v510 = vpack.c.b16 %v501, %v500
      %v511 = vpack.c.b16 %v503, %v502
      %520 = vmatprep.subr.bf16.mxu0 0
      %521 = vmatpush1.bf16.msra.mxu0 %v504
      %522 = vmatprep.subr.bf16.mxu0 0
      %523 = vmatpush1.bf16.msra.mxu0 %v505
      %524 = vmatprep.subr.bf16.mxu0 0
      %525 = vmatpush1.bf16.msra.mxu0 %v506
      %526 = vmatprep.subr.bf16.mxu0 0
      %527 = vmatpush1.bf16.msra.mxu0 %v507
      %528 = vmatprep.subr.bf16.mxu0 0
      %529 = vmatpush1.bf16.msra.mxu0 %v508
      %530 = vmatprep.subr.bf16.mxu0 0
      %531 = vmatpush1.bf16.msra.mxu0 %v509
      %532 = vmatprep.subr.bf16.mxu0 0
      %533 = vmatpush1.bf16.msra.mxu0 %v510
      %534 = vmatprep.subr.bf16.mxu0 0
      %535 = vmatpush1.bf16.msra.mxu0 %v511
      %536 = vmatprep.subr.bf16.mxu0 0
      %537 = vmatpush1.bf16.msra.mxu0 0
      %538 = vmatprep.subr.bf16.mxu0 0
      %539 = vmatpush1.bf16.msra.mxu0 0
      %540 = vmatprep.subr.bf16.mxu0 0
      %541 = vmatpush1.bf16.msra.mxu0 0
      %542 = vmatprep.subr.bf16.mxu0 0
      %543 = vmatpush1.bf16.msra.mxu0 0
      %544 = vmatprep.subr.bf16.mxu0 0
      %545 = vmatpush1.bf16.msra.mxu0 0
      %546 = vmatprep.subr.bf16.mxu0 0
      %547 = vmatpush1.bf16.msra.mxu0 0
      %548 = vmatprep.subr.bf16.mxu0 0
      %549 = vmatpush1.bf16.msra.mxu0 0
      %550 = vmatprep.subr.bf16.mxu0 0
      %551 = vmatpush1.bf16.msra.mxu0 0
      %552 = vmatprep.mubr.bf16.mxu0 0
      %553 = vmatmul.mubr.bf16.gmra.mrb[0].mxu0 %v440
      %v554 = vpop.f32.mrb[0].mxu0
      %v555 = vadd.f32 0.0, %v554
      %v556 = vpop.f32.mrb[0].mxu0
      %v557 = vpop.f32.mrb[0].mxu0
      %v558 = vadd.f32 0.0, %v557
      %v559 = vpop.f32.mrb[0].mxu0
      %560 = vmatprep.mubr.bf16.mxu0 0
      %561 = vmatmul.mubr.bf16.gmra.mrb[0].mxu0 %v441
      %v562 = vpop.f32.mrb[0].mxu0
      %v563 = vadd.f32 0.0, %v562
      %v564 = vpop.f32.mrb[0].mxu0
      %v565 = vpop.f32.mrb[0].mxu0
      %v566 = vadd.f32 0.0, %v565
      %v567 = vpop.f32.mrb[0].mxu0
      %568 = vmatprep.mubr.bf16.mxu0 0
      %569 = vmatmul.mubr.bf16.gmra.mrb[0].mxu0 %v442
      %v570 = vpop.f32.mrb[0].mxu0
      %v571 = vadd.f32 0.0, %v570
      %v572 = vpop.f32.mrb[0].mxu0
      %v573 = vpop.f32.mrb[0].mxu0
      %v574 = vadd.f32 0.0, %v573
      %v575 = vpop.f32.mrb[0].mxu0
      %576 = vmatprep.mubr.bf16.mxu0 0
      %577 = vmatmul.mubr.bf16.gmra.mrb[0].mxu0 %v443
      %v578 = vpop.f32.mrb[0].mxu0
      %v579 = vadd.f32 0.0, %v578
      %v580 = vpop.f32.mrb[0].mxu0
      %v581 = vpop.f32.mrb[0].mxu0
      %v582 = vadd.f32 0.0, %v581
      %v583 = vpop.f32.mrb[0].mxu0
      %584 = vmatprep.mubr.bf16.mxu0 0
      %585 = vmatmul.mubr.bf16.gmra.mrb[0].mxu0 %v444
      %v586 = vpop.f32.mrb[0].mxu0
      %v587 = vadd.f32 0.0, %v586
      %v588 = vpop.f32.mrb[0].mxu0
      %v589 = vpop.f32.mrb[0].mxu0
      %v590 = vadd.f32 0.0, %v589
      %v591 = vpop.f32.mrb[0].mxu0
      %592 = vmatprep.mubr.bf16.mxu0 0
      %593 = vmatmul.mubr.bf16.gmra.mrb[0].mxu0 %v445
      %v594 = vpop.f32.mrb[0].mxu0
      %v595 = vadd.f32 0.0, %v594
      %v596 = vpop.f32.mrb[0].mxu0
      %v597 = vpop.f32.mrb[0].mxu0
      %v598 = vadd.f32 0.0, %v597
      %v599 = vpop.f32.mrb[0].mxu0
      %600 = vmatprep.mubr.bf16.mxu0 0
      %601 = vmatmul.mubr.bf16.gmra.mrb[0].mxu0 %v446
      %v602 = vpop.f32.mrb[0].mxu0
      %v603 = vadd.f32 0.0, %v602
      %v604 = vpop.f32.mrb[0].mxu0
      %v605 = vpop.f32.mrb[0].mxu0
      %v606 = vadd.f32 0.0, %v605
      %v607 = vpop.f32.mrb[0].mxu0
      %608 = vmatprep.mubr.bf16.mxu0 0
      %609 = vmatmul.mubr.bf16.gmra.mrb[0].mxu0 %v447
      %v610 = vpop.f32.mrb[0].mxu0
      %v611 = vadd.f32 0.0, %v610
      %v612 = vpop.f32.mrb[0].mxu0
      %v613 = vpop.f32.mrb[0].mxu0
      %v614 = vadd.f32 0.0, %v613
      %v615 = vpop.f32.mrb[0].mxu0
      %616 = vmatprep.mubr.bf16.mxu0 0
      %617 = vmatmul.mubr.bf16.gmra.mrb[0].mxu0 %v448
      %v618 = vpop.f32.mrb[0].mxu0
      %v619 = vadd.f32 0.0, %v618
      %v620 = vpop.f32.mrb[0].mxu0
      %v621 = vpop.f32.mrb[0].mxu0
      %v622 = vadd.f32 0.0, %v621
      %v623 = vpop.f32.mrb[0].mxu0
      %624 = vmatprep.mubr.bf16.mxu0 0
      %625 = vmatmul.mubr.bf16.gmra.mrb[0].mxu0 %v449
      %v626 = vpop.f32.mrb[0].mxu0
      %v627 = vadd.f32 0.0, %v626
      %v628 = vpop.f32.mrb[0].mxu0
      %v629 = vpop.f32.mrb[0].mxu0
      %v630 = vadd.f32 0.0, %v629
      %v631 = vpop.f32.mrb[0].mxu0
      %632 = vmatprep.mubr.bf16.mxu0 0
      %633 = vmatmul.mubr.bf16.gmra.mrb[0].mxu0 %v450
      %v634 = vpop.f32.mrb[0].mxu0
      %v635 = vadd.f32 0.0, %v634
      %v636 = vpop.f32.mrb[0].mxu0
      %v637 = vpop.f32.mrb[0].mxu0
      %v638 = vadd.f32 0.0, %v637
      %v639 = vpop.f32.mrb[0].mxu0
      %640 = vmatprep.mubr.bf16.mxu0 0
      %641 = vmatmul.mubr.bf16.gmra.mrb[0].mxu0 %v451
      %v642 = vpop.f32.mrb[0].mxu0
      %v643 = vadd.f32 0.0, %v642
      %v644 = vpop.f32.mrb[0].mxu0
      %v645 = vpop.f32.mrb[0].mxu0
      %v646 = vadd.f32 0.0, %v645
      %v647 = vpop.f32.mrb[0].mxu0
      %648 = vmatprep.mubr.bf16.mxu0 0
      %649 = vmatmul.mubr.bf16.gmra.mrb[0].mxu0 %v452
      %v650 = vpop.f32.mrb[0].mxu0
      %v651 = vadd.f32 0.0, %v650
      %v652 = vpop.f32.mrb[0].mxu0
      %v653 = vpop.f32.mrb[0].mxu0
      %v654 = vadd.f32 0.0, %v653
      %v655 = vpop.f32.mrb[0].mxu0
      %656 = vmatprep.mubr.bf16.mxu0 0
      %657 = vmatmul.mubr.bf16.gmra.mrb[0].mxu0 %v453
      %v658 = vpop.f32.mrb[0].mxu0
      %v659 = vadd.f32 0.0, %v658
      %v660 = vpop.f32.mrb[0].mxu0
      %v661 = vpop.f32.mrb[0].mxu0
      %v662 = vadd.f32 0.0, %v661
      %v663 = vpop.f32.mrb[0].mxu0
      %664 = vmatprep.mubr.bf16.mxu0 0
      %665 = vmatmul.mubr.bf16.gmra.mrb[0].mxu0 %v454
      %v666 = vpop.f32.mrb[0].mxu0
      %v667 = vadd.f32 0.0, %v666
      %v668 = vpop.f32.mrb[0].mxu0
      %v669 = vpop.f32.mrb[0].mxu0
      %v670 = vadd.f32 0.0, %v669
      %v671 = vpop.f32.mrb[0].mxu0
      %672 = vmatprep.mubr.bf16.mxu0 0
      %673 = vmatmul.mubr.bf16.gmra.mrb[0].mxu0 %v455
      %v674 = vpop.f32.mrb[0].mxu0
      %v675 = vadd.f32 0.0, %v674
      %v676 = vpop.f32.mrb[0].mxu0
      %v677 = vpop.f32.mrb[0].mxu0
      %v678 = vadd.f32 0.0, %v677
      %v679 = vpop.f32.mrb[0].mxu0
      %680 = vdwg.mxu0
      %v681 = vadd.f32 %v296, %v555
      %v682 = vadd.f32 %v297, %v558
      %v683 = vadd.f32 %v298, %v563
      %v684 = vadd.f32 %v299, %v566
      %v685 = vadd.f32 %v300, %v571
      %v686 = vadd.f32 %v301, %v574
      %v687 = vadd.f32 %v302, %v579
      %v688 = vadd.f32 %v303, %v582
      %v689 = vadd.f32 %v304, %v587
      %v690 = vadd.f32 %v305, %v590
      %v691 = vadd.f32 %v306, %v595
      %v692 = vadd.f32 %v307, %v598
      %v693 = vadd.f32 %v308, %v603
      %v694 = vadd.f32 %v309, %v606
      %v695 = vadd.f32 %v310, %v611
      %v696 = vadd.f32 %v311, %v614
      %v697 = vadd.f32 %v312, %v619
      %v698 = vadd.f32 %v313, %v622
      %v699 = vadd.f32 %v314, %v627
      %v700 = vadd.f32 %v315, %v630
      %v701 = vadd.f32 %v316, %v635
      %v702 = vadd.f32 %v317, %v638
      %v703 = vadd.f32 %v318, %v643
      %v704 = vadd.f32 %v319, %v646
      %v705 = vadd.f32 %v320, %v651
      %v706 = vadd.f32 %v321, %v654
      %v707 = vadd.f32 %v322, %v659
      %v708 = vadd.f32 %v323, %v662
      %v709 = vadd.f32 %v324, %v667
      %v710 = vadd.f32 %v325, %v670
      %v711 = vadd.f32 %v326, %v675
      %v712 = vadd.f32 %v327, %v678
      %713 = vst [vmem:[#allocation2] sm:$0xff] %v681
      %714 = vst [vmem:[#allocation2 + $0x8] sm:$0xff] %v682
      %715 = vst [vmem:[#allocation2 + $0x10] sm:$0xff] %v683
      %716 = vst [vmem:[#allocation2 + $0x18] sm:$0xff] %v684
      %717 = vst [vmem:[#allocation2 + $0x20] sm:$0xff] %v685
      %718 = vst [vmem:[#allocation2 + $0x28] sm:$0xff] %v686
      %719 = vst [vmem:[#allocation2 + $0x30] sm:$0xff] %v687
      %720 = vst [vmem:[#allocation2 + $0x38] sm:$0xff] %v688
      %721 = vst [vmem:[#allocation2 + $0x40] sm:$0xff] %v689
      %722 = vst [vmem:[#allocation2 + $0x48] sm:$0xff] %v690
      %723 = vst [vmem:[#allocation2 + $0x50] sm:$0xff] %v691
      %724 = vst [vmem:[#allocation2 + $0x58] sm:$0xff] %v692
      %725 = vst [vmem:[#allocation2 + $0x60] sm:$0xff] %v693
      %726 = vst [vmem:[#allocation2 + $0x68] sm:$0xff] %v694
      %727 = vst [vmem:[#allocation2 + $0x70] sm:$0xff] %v695
      %728 = vst [vmem:[#allocation2 + $0x78] sm:$0xff] %v696
      %729 = vst [vmem:[#allocation2 + $0x80] sm:$0xff] %v697
      %730 = vst [vmem:[#allocation2 + $0x88] sm:$0xff] %v698
      %731 = vst [vmem:[#allocation2 + $0x90] sm:$0xff] %v699
      %732 = vst [vmem:[#allocation2 + $0x98] sm:$0xff] %v700
      %733 = vst [vmem:[#allocation2 + $0xa0] sm:$0xff] %v701
      %734 = vst [vmem:[#allocation2 + $0xa8] sm:$0xff] %v702
      %735 = vst [vmem:[#allocation2 + $0xb0] sm:$0xff] %v703
      %736 = vst [vmem:[#allocation2 + $0xb8] sm:$0xff] %v704
      %737 = vst [vmem:[#allocation2 + $0xc0] sm:$0xff] %v705
      %738 = vst [vmem:[#allocation2 + $0xc8] sm:$0xff] %v706
      %739 = vst [vmem:[#allocation2 + $0xd0] sm:$0xff] %v707
      %740 = vst [vmem:[#allocation2 + $0xd8] sm:$0xff] %v708
      %741 = vst [vmem:[#allocation2 + $0xe0] sm:$0xff] %v709
      %742 = vst [vmem:[#allocation2 + $0xe8] sm:$0xff] %v710
      %743 = vst [vmem:[#allocation2 + $0xf0] sm:$0xff] %v711
      %744 = vst [vmem:[#allocation2 + $0xf8] sm:$0xff] %v712
      // Predicated region
      $region37: #{bottleneck_forward.3} parent=31 // pred_check
        %p745 = pneg %p260
      $region38: #{bottleneck_forward.3} parent=31 // pred_check_branch
        %747 = sbr.rel (%p745) target = $region40
      $region39: #{bottleneck_forward.3} parent=31 // pred_region
        %v748 = vld [vmem:[#allocation2] sm:$0xff]
        %v749 = vld [vmem:[#allocation2 + $0x8] sm:$0xff]
        %v750 = vld [vmem:[#allocation2 + $0x10] sm:$0xff]
        %v751 = vld [vmem:[#allocation2 + $0x18] sm:$0xff]
        %v752 = vld [vmem:[#allocation2 + $0x20] sm:$0xff]
        %v753 = vld [vmem:[#allocation2 + $0x28] sm:$0xff]
        %v754 = vld [vmem:[#allocation2 + $0x30] sm:$0xff]
        %v755 = vld [vmem:[#allocation2 + $0x38] sm:$0xff]
        %v756 = vld [vmem:[#allocation2 + $0x40] sm:$0xff]
        %v757 = vld [vmem:[#allocation2 + $0x48] sm:$0xff]
        %v758 = vld [vmem:[#allocation2 + $0x50] sm:$0xff]
        %v759 = vld [vmem:[#allocation2 + $0x58] sm:$0xff]
        %v760 = vld [vmem:[#allocation2 + $0x60] sm:$0xff]
        %v761 = vld [vmem:[#allocation2 + $0x68] sm:$0xff]
        %v762 = vld [vmem:[#allocation2 + $0x70] sm:$0xff]
        %v763 = vld [vmem:[#allocation2 + $0x78] sm:$0xff]
        %v764 = vld [vmem:[#allocation2 + $0x80] sm:$0xff]
        %v765 = vld [vmem:[#allocation2 + $0x88] sm:$0xff]
        %v766 = vld [vmem:[#allocation2 + $0x90] sm:$0xff]
        %v767 = vld [vmem:[#allocation2 + $0x98] sm:$0xff]
        %v768 = vld [vmem:[#allocation2 + $0xa0] sm:$0xff]
        %v769 = vld [vmem:[#allocation2 + $0xa8] sm:$0xff]
        %v770 = vld [vmem:[#allocation2 + $0xb0] sm:$0xff]
        %v771 = vld [vmem:[#allocation2 + $0xb8] sm:$0xff]
        %v772 = vld [vmem:[#allocation2 + $0xc0] sm:$0xff]
        %v773 = vld [vmem:[#allocation2 + $0xc8] sm:$0xff]
        %v774 = vld [vmem:[#allocation2 + $0xd0] sm:$0xff]
        %v775 = vld [vmem:[#allocation2 + $0xd8] sm:$0xff]
        %v776 = vld [vmem:[#allocation2 + $0xe0] sm:$0xff]
        %v777 = vld [vmem:[#allocation2 + $0xe8] sm:$0xff]
        %v778 = vld [vmem:[#allocation2 + $0xf0] sm:$0xff]
        %v779 = vld [vmem:[#allocation2 + $0xf8] sm:$0xff]
        %v780 = vld [vmem:[%s249] sm:$0x1]
        %v782 = vlaneseq
        %v783 = vshrl.u32 %v782, 7
        %v784 = vsub.s32 0, %v783
        %v785 = vrot.slane %v780, %v784
        %v787 = vadd.f32 %v748, %v785
        %v788 = vadd.f32 %v749, %v785
        %v789 = vadd.f32 %v750, %v785
        %v790 = vadd.f32 %v751, %v785
        %v791 = vadd.f32 %v752, %v785
        %v792 = vadd.f32 %v753, %v785
        %v793 = vadd.f32 %v754, %v785
        %v794 = vadd.f32 %v755, %v785
        %v795 = vadd.f32 %v756, %v785
        %v796 = vadd.f32 %v757, %v785
        %v797 = vadd.f32 %v758, %v785
        %v798 = vadd.f32 %v759, %v785
        %v799 = vadd.f32 %v760, %v785
        %v800 = vadd.f32 %v761, %v785
        %v801 = vadd.f32 %v762, %v785
        %v802 = vadd.f32 %v763, %v785
        %v803 = vadd.f32 %v764, %v785
        %v804 = vadd.f32 %v765, %v785
        %v805 = vadd.f32 %v766, %v785
        %v806 = vadd.f32 %v767, %v785
        %v807 = vadd.f32 %v768, %v785
        %v808 = vadd.f32 %v769, %v785
        %v809 = vadd.f32 %v770, %v785
        %v810 = vadd.f32 %v771, %v785
        %v811 = vadd.f32 %v772, %v785
        %v812 = vadd.f32 %v773, %v785
        %v813 = vadd.f32 %v774, %v785
        %v814 = vadd.f32 %v775, %v785
        %v815 = vadd.f32 %v776, %v785
        %v816 = vadd.f32 %v777, %v785
        %v817 = vadd.f32 %v778, %v785
        %v818 = vadd.f32 %v779, %v785
        %v819 = vmax.f32 %v787, 0.0
        %v820 = vmax.f32 %v788, 0.0
        %v821 = vmax.f32 %v789, 0.0
        %v822 = vmax.f32 %v790, 0.0
        %v823 = vmax.f32 %v791, 0.0
        %v824 = vmax.f32 %v792, 0.0
        %v825 = vmax.f32 %v793, 0.0
        %v826 = vmax.f32 %v794, 0.0
        %v827 = vmax.f32 %v795, 0.0
        %v828 = vmax.f32 %v796, 0.0
        %v829 = vmax.f32 %v797, 0.0
        %v830 = vmax.f32 %v798, 0.0
        %v831 = vmax.f32 %v799, 0.0
        %v832 = vmax.f32 %v800, 0.0
        %v833 = vmax.f32 %v801, 0.0
        %v834 = vmax.f32 %v802, 0.0
        %v835 = vmax.f32 %v803, 0.0
        %v836 = vmax.f32 %v804, 0.0
        %v837 = vmax.f32 %v805, 0.0
        %v838 = vmax.f32 %v806, 0.0
        %v839 = vmax.f32 %v807, 0.0
        %v840 = vmax.f32 %v808, 0.0
        %v841 = vmax.f32 %v809, 0.0
        %v842 = vmax.f32 %v810, 0.0
        %v843 = vmax.f32 %v811, 0.0
        %v844 = vmax.f32 %v812, 0.0
        %v845 = vmax.f32 %v813, 0.0
        %v846 = vmax.f32 %v814, 0.0
        %v847 = vmax.f32 %v815, 0.0
        %v848 = vmax.f32 %v816, 0.0
        %v849 = vmax.f32 %v817, 0.0
        %v850 = vmax.f32 %v818, 0.0
        %v851 = vpack.c.bf16 %v820, %v819
        %v852 = vpack.c.bf16 %v822, %v821
        %v853 = vpack.c.bf16 %v824, %v823
        %v854 = vpack.c.bf16 %v826, %v825
        %v855 = vpack.c.bf16 %v828, %v827
        %v856 = vpack.c.bf16 %v830, %v829
        %v857 = vpack.c.bf16 %v832, %v831
        %v858 = vpack.c.bf16 %v834, %v833
        %v859 = vpack.c.bf16 %v836, %v835
        %v860 = vpack.c.bf16 %v838, %v837
        %v861 = vpack.c.bf16 %v840, %v839
        %v862 = vpack.c.bf16 %v842, %v841
        %v863 = vpack.c.bf16 %v844, %v843
        %v864 = vpack.c.bf16 %v846, %v845
        %v865 = vpack.c.bf16 %v848, %v847
        %v866 = vpack.c.bf16 %v850, %v849
        %v883 = vunpack.c.l.b16 %v851
        %v884 = vunpack.c.h.b16 %v851
        %v885 = vunpack.c.l.b16 %v852
        %v886 = vunpack.c.h.b16 %v852
        %v887 = vunpack.c.l.b16 %v853
        %v888 = vunpack.c.h.b16 %v853
        %v889 = vunpack.c.l.b16 %v854
        %v890 = vunpack.c.h.b16 %v854
        %v891 = vunpack.c.l.b16 %v855
        %v892 = vunpack.c.h.b16 %v855
        %v893 = vunpack.c.l.b16 %v856
        %v894 = vunpack.c.h.b16 %v856
        %v895 = vunpack.c.l.b16 %v857
        %v896 = vunpack.c.h.b16 %v857
        %v897 = vunpack.c.l.b16 %v858
        %v898 = vunpack.c.h.b16 %v858
        %v899 = vunpack.c.l.b16 %v859
        %v900 = vunpack.c.h.b16 %v859
        %v901 = vunpack.c.l.b16 %v860
        %v902 = vunpack.c.h.b16 %v860
        %v903 = vunpack.c.l.b16 %v861
        %v904 = vunpack.c.h.b16 %v861
        %v905 = vunpack.c.l.b16 %v862
        %v906 = vunpack.c.h.b16 %v862
        %v907 = vunpack.c.l.b16 %v863
        %v908 = vunpack.c.h.b16 %v863
        %v909 = vunpack.c.l.b16 %v864
        %v910 = vunpack.c.h.b16 %v864
        %v911 = vunpack.c.l.b16 %v865
        %v912 = vunpack.c.h.b16 %v865
        %v913 = vunpack.c.l.b16 %v866
        %v914 = vunpack.c.h.b16 %v866
        %v915 = vpack.c.b16 %v883, %v883
        %v916 = vpack.c.b16 %v884, %v884
        %v917 = vpack.c.b16 %v885, %v885
        %v918 = vpack.c.b16 %v886, %v886
        %v919 = vpack.c.b16 %v887, %v887
        %v920 = vpack.c.b16 %v888, %v888
        %v921 = vpack.c.b16 %v889, %v889
        %v922 = vpack.c.b16 %v890, %v890
        %v923 = vpack.c.b16 %v891, %v891
        %v924 = vpack.c.b16 %v892, %v892
        %v925 = vpack.c.b16 %v893, %v893
        %v926 = vpack.c.b16 %v894, %v894
        %v927 = vpack.c.b16 %v895, %v895
        %v928 = vpack.c.b16 %v896, %v896
        %v929 = vpack.c.b16 %v897, %v897
        %v930 = vpack.c.b16 %v898, %v898
        %v931 = vpack.c.b16 %v899, %v899
        %v932 = vpack.c.b16 %v900, %v900
        %v933 = vpack.c.b16 %v901, %v901
        %v934 = vpack.c.b16 %v902, %v902
        %v935 = vpack.c.b16 %v903, %v903
        %v936 = vpack.c.b16 %v904, %v904
        %v937 = vpack.c.b16 %v905, %v905
        %v938 = vpack.c.b16 %v906, %v906
        %v939 = vpack.c.b16 %v907, %v907
        %v940 = vpack.c.b16 %v908, %v908
        %v941 = vpack.c.b16 %v909, %v909
        %v942 = vpack.c.b16 %v910, %v910
        %v943 = vpack.c.b16 %v911, %v911
        %v944 = vpack.c.b16 %v912, %v912
        %v945 = vpack.c.b16 %v913, %v913
        %v946 = vpack.c.b16 %v914, %v914
        %979 = vst [vmem:[%s257] sm:$0xf] %v915
        %980 = vst [vmem:[%s257 + $0x4] sm:$0xf] %v916
        %981 = vst [vmem:[%s257 + $0x8] sm:$0xf] %v917
        %982 = vst [vmem:[%s257 + $0xc] sm:$0xf] %v918
        %983 = vst [vmem:[%s257 + $0x10] sm:$0xf] %v919
        %984 = vst [vmem:[%s257 + $0x14] sm:$0xf] %v920
        %985 = vst [vmem:[%s257 + $0x18] sm:$0xf] %v921
        %986 = vst [vmem:[%s257 + $0x1c] sm:$0xf] %v922
        %987 = vst [vmem:[%s257 + $0x20] sm:$0xf] %v923
        %988 = vst [vmem:[%s257 + $0x24] sm:$0xf] %v924
        %989 = vst [vmem:[%s257 + $0x28] sm:$0xf] %v925
        %990 = vst [vmem:[%s257 + $0x2c] sm:$0xf] %v926
        %991 = vst [vmem:[%s257 + $0x30] sm:$0xf] %v927
        %992 = vst [vmem:[%s257 + $0x34] sm:$0xf] %v928
        %993 = vst [vmem:[%s257 + $0x38] sm:$0xf] %v929
        %994 = vst [vmem:[%s257 + $0x3c] sm:$0xf] %v930
        %995 = vst [vmem:[%s257 + $0x40] sm:$0xf] %v931
        %996 = vst [vmem:[%s257 + $0x44] sm:$0xf] %v932
        %997 = vst [vmem:[%s257 + $0x48] sm:$0xf] %v933
        %998 = vst [vmem:[%s257 + $0x4c] sm:$0xf] %v934
        %999 = vst [vmem:[%s257 + $0x50] sm:$0xf] %v935
        %1000 = vst [vmem:[%s257 + $0x54] sm:$0xf] %v936
        %1001 = vst [vmem:[%s257 + $0x58] sm:$0xf] %v937
        %1002 = vst [vmem:[%s257 + $0x5c] sm:$0xf] %v938
        %1003 = vst [vmem:[%s257 + $0x60] sm:$0xf] %v939
        %1004 = vst [vmem:[%s257 + $0x64] sm:$0xf] %v940
        %1005 = vst [vmem:[%s257 + $0x68] sm:$0xf] %v941
        %1006 = vst [vmem:[%s257 + $0x6c] sm:$0xf] %v942
        %1007 = vst [vmem:[%s257 + $0x70] sm:$0xf] %v943
        %1008 = vst [vmem:[%s257 + $0x74] sm:$0xf] %v944
        %1009 = vst [vmem:[%s257 + $0x78] sm:$0xf] %v945
        %1010 = vst [vmem:[%s257 + $0x7c] sm:$0xf] %v946
      $region40: #{bottleneck_forward.3} parent=31 // pred_fallthru
        _
      %s1011 = smul.u32 32, %s19
      %p1012 = scmp.lt.s32.totalorder %s1011, 63
      %s1013 = scalar_select %p1012, %s1011, 63
      %p1014 = scmp.lt.s32.totalorder %s20, 0
      %s1015 = scalar_select %p1014, %s20, 0
      %s1016 = sadd.s32 %s1015, %s1013
      %s1017 = smul.addr %s1016, 4
      %s1018 = scalar_lea.vmem %s3, %s1017
      // Predicated region
      $region41: #{bottleneck_forward.3} parent=31 // pred_check
        %p1019 = pneg %p135
      $region42: #{bottleneck_forward.3} parent=31 // pred_check_branch
        %1021 = sbr.rel (%p1019) target = $region44
      $region43: #{bottleneck_forward.3} parent=31 // pred_region
        %s1022 = smul.u32 32, %s19
      $region44: #{bottleneck_forward.3} parent=31 // pred_fallthru
        _
    $region32: #{bottleneck_forward.3} parent=5 // pred_fallthru
      _
    %p1023 = scmp.le.s32.totalorder 2, %s9
    // Predicated region
    $region45: #{bottleneck_forward.3} parent=5 // pred_check
      %p1024 = pneg %p1023
    $region46: #{bottleneck_forward.3} parent=5 // pred_check_branch
      %1026 = sbr.rel (%p1024) target = $region48
    $region47: #{bottleneck_forward.3} parent=5 // pred_region
      %s1027 = ssub.s32 %s9, 2
      // Predicated region
      $region49: #{bottleneck_forward.3} parent=47 // pred_check
        %p1028 = pneg %p141
      $region50: #{bottleneck_forward.3} parent=47 // pred_check_branch
        %1030 = sbr.rel (%p1028) target = $region52
      $region51: #{bottleneck_forward.3} parent=47 // pred_region
        %s1031 = smul.u32 32, %s22
        %p1032 = scmp.lt.s32.totalorder %s1031, 63
        %s1033 = scalar_select %p1032, %s1031, 63
        %p1034 = scmp.lt.s32.totalorder %s23, 0
        %s1035 = scalar_select %p1034, %s23, 0
        %s1036 = sadd.s32 %s1035, %s1033
        %s1037 = smul.addr %s1036, 4
        %s1038 = scalar_lea.vmem %s3, %s1037
      $region52: #{bottleneck_forward.3} parent=47 // pred_fallthru
        _
    $region48: #{bottleneck_forward.3} parent=5 // pred_fallthru
      _
  $region6: #{bottleneck_forward.3} parent=0 // loop_footer
    %s13 = sadd.s32 1, %s9
  $region7: #{bottleneck_forward.3} parent=0 // loop_footer_branch
    %8 = sbr.rel target = $region3
  $region8: #{bottleneck_forward.3} parent=0 // loop_exit
    _

// kernel: bottleneck_forward.5
$region0: #{bottleneck_forward.5}
  #allocation0 [shape = 'u32[]', space=smem, size = 0x4, offset = 0x4, fixed_abs, tag = 'smem constant byte address 0x4 - core index']
  #allocation1 [shape = 'u32[144,128]{1,0:T(1,128)}', space=vmem, size = 0x12000, scoped, tag = 'internal scratch']
  #allocation2 [shape = 'f32[128,128]{1,0:T(8,128)}', space=vmem, size = 0x10000, scoped, tag = 'scratch operand']
  %s0 = inlined_call_operand.vmem [shape: bf16[128,128], index: 0, kind: input, shape index: {}]
  %s1 = inlined_call_operand.vmem [shape: bf16[128,128], index: 1, kind: input, shape index: {}]
  %s2 = inlined_call_operand.vmem [shape: bf16[128,128], index: 2, kind: input, shape index: {}]
  %s3 = inlined_call_operand.vmem [shape: bf16[128,128], index: 3, kind: input, shape index: {}]
  %s4 = inlined_call_operand.vmem [shape: f32[1,128], index: 4, kind: input, shape index: {}]
  %s5 = inlined_call_operand.vmem [shape: f32[128,128], index: 5, kind: output, shape index: {}]
  %s6 = sld [smem:[#allocation0]]
  $region38: #{bottleneck_forward.5} parent=0
    _
  %s8 = ssub.s32 1, %s6
  %s9 = scalar_select 0, %s8, %s6
  // Predicated region
  $region2: #{bottleneck_forward.5} parent=0 // pred_check
    _
  $region3: #{bottleneck_forward.5} parent=0 // pred_check_branch
    %11 = sbr.rel (0) target = $region5
  $region4: #{bottleneck_forward.5} parent=0 // pred_region
    _
  $region5: #{bottleneck_forward.5} parent=0 // pred_fallthru
    _
  // Predicated region
  $region6: #{bottleneck_forward.5} parent=0 // pred_check
    _
  $region7: #{bottleneck_forward.5} parent=0 // pred_check_branch
    %13 = sbr.rel (0) target = $region9
  $region8: #{bottleneck_forward.5} parent=0 // pred_region
    _
  $region9: #{bottleneck_forward.5} parent=0 // pred_fallthru
    _
  // Predicated region
  $region10: #{bottleneck_forward.5} parent=0 // pred_check
    _
  $region11: #{bottleneck_forward.5} parent=0 // pred_check_branch
    %15 = sbr.rel (0) target = $region13
  $region12: #{bottleneck_forward.5} parent=0 // pred_region
    _
  $region13: #{bottleneck_forward.5} parent=0 // pred_fallthru
    _
  // Predicated region
  $region14: #{bottleneck_forward.5} parent=0 // pred_check
    _
  $region15: #{bottleneck_forward.5} parent=0 // pred_check_branch
    %17 = sbr.rel (0) target = $region17
  $region16: #{bottleneck_forward.5} parent=0 // pred_region
    _
  $region17: #{bottleneck_forward.5} parent=0 // pred_fallthru
    _
  // Predicated region
  $region18: #{bottleneck_forward.5} parent=0 // pred_check
    _
  $region19: #{bottleneck_forward.5} parent=0 // pred_check_branch
    %19 = sbr.rel (0) target = $region21
  $region20: #{bottleneck_forward.5} parent=0 // pred_region
    _
  $region21: #{bottleneck_forward.5} parent=0 // pred_fallthru
    _
  %p21 = scmp.eq.s32.totalorder 0, 0
  // Predicated region
  $region22: #{bottleneck_forward.5} parent=0 // pred_check
    %p22 = pneg %p21
  $region23: #{bottleneck_forward.5} parent=0 // pred_check_branch
    %24 = sbr.rel (%p22) target = $region25
  $region24: #{bottleneck_forward.5} parent=0 // pred_region
    %v25 = vld [vmem:[%s2] sm:$0xf]
    %v26 = vld [vmem:[%s2 + $0x4] sm:$0xf]
    %v27 = vld [vmem:[%s2 + $0x8] sm:$0xf]
    %v28 = vld [vmem:[%s2 + $0xc] sm:$0xf]
    %v29 = vld [vmem:[%s2 + $0x10] sm:$0xf]
    %v30 = vld [vmem:[%s2 + $0x14] sm:$0xf]
    %v31 = vld [vmem:[%s2 + $0x18] sm:$0xf]
    %v32 = vld [vmem:[%s2 + $0x1c] sm:$0xf]
    %v33 = vld [vmem:[%s2 + $0x20] sm:$0xf]
    %v34 = vld [vmem:[%s2 + $0x24] sm:$0xf]
    %v35 = vld [vmem:[%s2 + $0x28] sm:$0xf]
    %v36 = vld [vmem:[%s2 + $0x2c] sm:$0xf]
    %v37 = vld [vmem:[%s2 + $0x30] sm:$0xf]
    %v38 = vld [vmem:[%s2 + $0x34] sm:$0xf]
    %v39 = vld [vmem:[%s2 + $0x38] sm:$0xf]
    %v40 = vld [vmem:[%s2 + $0x3c] sm:$0xf]
    %v41 = vld [vmem:[%s3] sm:$0xf]
    %v42 = vld [vmem:[%s3 + $0x4] sm:$0xf]
    %v43 = vld [vmem:[%s3 + $0x8] sm:$0xf]
    %v44 = vld [vmem:[%s3 + $0xc] sm:$0xf]
    %v45 = vld [vmem:[%s3 + $0x10] sm:$0xf]
    %v46 = vld [vmem:[%s3 + $0x14] sm:$0xf]
    %v47 = vld [vmem:[%s3 + $0x18] sm:$0xf]
    %v48 = vld [vmem:[%s3 + $0x1c] sm:$0xf]
    %v49 = vld [vmem:[%s3 + $0x20] sm:$0xf]
    %v50 = vld [vmem:[%s3 + $0x24] sm:$0xf]
    %v51 = vld [vmem:[%s3 + $0x28] sm:$0xf]
    %v52 = vld [vmem:[%s3 + $0x2c] sm:$0xf]
    %v53 = vld [vmem:[%s3 + $0x30] sm:$0xf]
    %v54 = vld [vmem:[%s3 + $0x34] sm:$0xf]
    %v55 = vld [vmem:[%s3 + $0x38] sm:$0xf]
    %v56 = vld [vmem:[%s3 + $0x3c] sm:$0xf]
    %v73 = vunpack.c.l.b16 %v25
    %v74 = vunpack.c.l.b16 %v26
    %v75 = vunpack.c.l.b16 %v27
    %v76 = vunpack.c.l.b16 %v28
    %v77 = vunpack.c.l.b16 %v29
    %v78 = vunpack.c.l.b16 %v30
    %v79 = vunpack.c.l.b16 %v31
    %v80 = vunpack.c.l.b16 %v32
    %v81 = vunpack.c.l.b16 %v33
    %v82 = vunpack.c.l.b16 %v34
    %v83 = vunpack.c.l.b16 %v35
    %v84 = vunpack.c.l.b16 %v36
    %v85 = vunpack.c.l.b16 %v37
    %v86 = vunpack.c.l.b16 %v38
    %v87 = vunpack.c.l.b16 %v39
    %v88 = vunpack.c.l.b16 %v40
    %v89 = vpack.c.b16 %v74, %v73
    %v90 = vpack.c.b16 %v76, %v75
    %v91 = vpack.c.b16 %v78, %v77
    %v92 = vpack.c.b16 %v80, %v79
    %v93 = vpack.c.b16 %v82, %v81
    %v94 = vpack.c.b16 %v84, %v83
    %v95 = vpack.c.b16 %v86, %v85
    %v96 = vpack.c.b16 %v88, %v87
    %v121 = vunpack.c.l.b16 %v41
    %v122 = vunpack.c.l.b16 %v42
    %v123 = vunpack.c.l.b16 %v43
    %v124 = vunpack.c.l.b16 %v44
    %v125 = vunpack.c.l.b16 %v45
    %v126 = vunpack.c.l.b16 %v46
    %v127 = vunpack.c.l.b16 %v47
    %v128 = vunpack.c.l.b16 %v48
    %v129 = vunpack.c.l.b16 %v49
    %v130 = vunpack.c.l.b16 %v50
    %v131 = vunpack.c.l.b16 %v51
    %v132 = vunpack.c.l.b16 %v52
    %v133 = vunpack.c.l.b16 %v53
    %v134 = vunpack.c.l.b16 %v54
    %v135 = vunpack.c.l.b16 %v55
    %v136 = vunpack.c.l.b16 %v56
    %v137 = vpack.c.b16 %v122, %v121
    %v138 = vpack.c.b16 %v124, %v123
    %v139 = vpack.c.b16 %v126, %v125
    %v140 = vpack.c.b16 %v128, %v127
    %v141 = vpack.c.b16 %v130, %v129
    %v142 = vpack.c.b16 %v132, %v131
    %v143 = vpack.c.b16 %v134, %v133
    %v144 = vpack.c.b16 %v136, %v135
    %153 = vmatprep.subr.bf16.mxu0 0
    %154 = vmatpush1.bf16.msra.mxu0 %v137
    %155 = vmatprep.subr.bf16.mxu0 0
    %156 = vmatpush1.bf16.msra.mxu0 %v138
    %157 = vmatprep.subr.bf16.mxu0 0
    %158 = vmatpush1.bf16.msra.mxu0 %v139
    %159 = vmatprep.subr.bf16.mxu0 0
    %160 = vmatpush1.bf16.msra.mxu0 %v140
    %161 = vmatprep.subr.bf16.mxu0 0
    %162 = vmatpush1.bf16.msra.mxu0 %v141
    %163 = vmatprep.subr.bf16.mxu0 0
    %164 = vmatpush1.bf16.msra.mxu0 %v142
    %165 = vmatprep.subr.bf16.mxu0 0
    %166 = vmatpush1.bf16.msra.mxu0 %v143
    %167 = vmatprep.subr.bf16.mxu0 0
    %168 = vmatpush1.bf16.msra.mxu0 %v144
    %169 = vmatprep.subr.bf16.mxu0 0
    %170 = vmatpush1.bf16.msra.mxu0 0
    %171 = vmatprep.subr.bf16.mxu0 0
    %172 = vmatpush1.bf16.msra.mxu0 0
    %173 = vmatprep.subr.bf16.mxu0 0
    %174 = vmatpush1.bf16.msra.mxu0 0
    %175 = vmatprep.subr.bf16.mxu0 0
    %176 = vmatpush1.bf16.msra.mxu0 0
    %177 = vmatprep.subr.bf16.mxu0 0
    %178 = vmatpush1.bf16.msra.mxu0 0
    %179 = vmatprep.subr.bf16.mxu0 0
    %180 = vmatpush1.bf16.msra.mxu0 0
    %181 = vmatprep.subr.bf16.mxu0 0
    %182 = vmatpush1.bf16.msra.mxu0 0
    %183 = vmatprep.subr.bf16.mxu0 0
    %184 = vmatpush1.bf16.msra.mxu0 0
    %185 = vmatprep.mubr.bf16.mxu0 0
    %186 = vmatmul.mubr.bf16.gmra.mrb[0].mxu0 %v89
    %v187 = vpop.f32.mrb[0].mxu0
    %v188 = vadd.f32 0.0, %v187
    %v189 = vpop.f32.mrb[0].mxu0
    %v190 = vpop.f32.mrb[0].mxu0
    %v191 = vadd.f32 0.0, %v190
    %v192 = vpop.f32.mrb[0].mxu0
    %193 = vmatprep.mubr.bf16.mxu0 0
    %194 = vmatmul.mubr.bf16.gmra.mrb[0].mxu0 %v90
    %v195 = vpop.f32.mrb[0].mxu0
    %v196 = vadd.f32 0.0, %v195
    %v197 = vpop.f32.mrb[0].mxu0
    %v198 = vpop.f32.mrb[0].mxu0
    %v199 = vadd.f32 0.0, %v198
    %v200 = vpop.f32.mrb[0].mxu0
    %201 = vmatprep.mubr.bf16.mxu0 0
    %202 = vmatmul.mubr.bf16.gmra.mrb[0].mxu0 %v91
    %v203 = vpop.f32.mrb[0].mxu0
    %v204 = vadd.f32 0.0, %v203
    %v205 = vpop.f32.mrb[0].mxu0
    %v206 = vpop.f32.mrb[0].mxu0
    %v207 = vadd.f32 0.0, %v206
    %v208 = vpop.f32.mrb[0].mxu0
    %209 = vmatprep.mubr.bf16.mxu0 0
    %210 = vmatmul.mubr.bf16.gmra.mrb[0].mxu0 %v92
    %v211 = vpop.f32.mrb[0].mxu0
    %v212 = vadd.f32 0.0, %v211
    %v213 = vpop.f32.mrb[0].mxu0
    %v214 = vpop.f32.mrb[0].mxu0
    %v215 = vadd.f32 0.0, %v214
    %v216 = vpop.f32.mrb[0].mxu0
    %217 = vmatprep.mubr.bf16.mxu0 0
    %218 = vmatmul.mubr.bf16.gmra.mrb[0].mxu0 %v93
    %v219 = vpop.f32.mrb[0].mxu0
    %v220 = vadd.f32 0.0, %v219
    %v221 = vpop.f32.mrb[0].mxu0
    %v222 = vpop.f32.mrb[0].mxu0
    %v223 = vadd.f32 0.0, %v222
    %v224 = vpop.f32.mrb[0].mxu0
    %225 = vmatprep.mubr.bf16.mxu0 0
    %226 = vmatmul.mubr.bf16.gmra.mrb[0].mxu0 %v94
    %v227 = vpop.f32.mrb[0].mxu0
    %v228 = vadd.f32 0.0, %v227
    %v229 = vpop.f32.mrb[0].mxu0
    %v230 = vpop.f32.mrb[0].mxu0
    %v231 = vadd.f32 0.0, %v230
    %v232 = vpop.f32.mrb[0].mxu0
    %233 = vmatprep.mubr.bf16.mxu0 0
    %234 = vmatmul.mubr.bf16.gmra.mrb[0].mxu0 %v95
    %v235 = vpop.f32.mrb[0].mxu0
    %v236 = vadd.f32 0.0, %v235
    %v237 = vpop.f32.mrb[0].mxu0
    %v238 = vpop.f32.mrb[0].mxu0
    %v239 = vadd.f32 0.0, %v238
    %v240 = vpop.f32.mrb[0].mxu0
    %241 = vmatprep.mubr.bf16.mxu0 0
    %242 = vmatmul.mubr.bf16.gmra.mrb[0].mxu0 %v96
    %v243 = vpop.f32.mrb[0].mxu0
    %v244 = vadd.f32 0.0, %v243
    %v245 = vpop.f32.mrb[0].mxu0
    %v246 = vpop.f32.mrb[0].mxu0
    %v247 = vadd.f32 0.0, %v246
    %v248 = vpop.f32.mrb[0].mxu0
    %249 = vdwg.mxu0
    %250 = vst [vmem:[#allocation2] sm:$0xff] %v188
    %251 = vst [vmem:[#allocation2 + $0x8] sm:$0xff] %v191
    %252 = vst [vmem:[#allocation2 + $0x10] sm:$0xff] %v196
    %253 = vst [vmem:[#allocation2 + $0x18] sm:$0xff] %v199
    %254 = vst [vmem:[#allocation2 + $0x20] sm:$0xff] %v204
    %255 = vst [vmem:[#allocation2 + $0x28] sm:$0xff] %v207
    %256 = vst [vmem:[#allocation2 + $0x30] sm:$0xff] %v212
    %257 = vst [vmem:[#allocation2 + $0x38] sm:$0xff] %v215
    %258 = vst [vmem:[#allocation2 + $0x40] sm:$0xff] %v220
    %259 = vst [vmem:[#allocation2 + $0x48] sm:$0xff] %v223
    %260 = vst [vmem:[#allocation2 + $0x50] sm:$0xff] %v228
    %261 = vst [vmem:[#allocation2 + $0x58] sm:$0xff] %v231
    %262 = vst [vmem:[#allocation2 + $0x60] sm:$0xff] %v236
    %263 = vst [vmem:[#allocation2 + $0x68] sm:$0xff] %v239
    %264 = vst [vmem:[#allocation2 + $0x70] sm:$0xff] %v244
    %265 = vst [vmem:[#allocation2 + $0x78] sm:$0xff] %v247
  $region25: #{bottleneck_forward.5} parent=0 // pred_fallthru
    _
  %v266 = vld [vmem:[#allocation2] sm:$0xff]
  %v267 = vld [vmem:[#allocation2 + $0x8] sm:$0xff]
  %v268 = vld [vmem:[#allocation2 + $0x10] sm:$0xff]
  %v269 = vld [vmem:[#allocation2 + $0x18] sm:$0xff]
  %v270 = vld [vmem:[#allocation2 + $0x20] sm:$0xff]
  %v271 = vld [vmem:[#allocation2 + $0x28] sm:$0xff]
  %v272 = vld [vmem:[#allocation2 + $0x30] sm:$0xff]
  %v273 = vld [vmem:[#allocation2 + $0x38] sm:$0xff]
  %v274 = vld [vmem:[#allocation2 + $0x40] sm:$0xff]
  %v275 = vld [vmem:[#allocation2 + $0x48] sm:$0xff]
  %v276 = vld [vmem:[#allocation2 + $0x50] sm:$0xff]
  %v277 = vld [vmem:[#allocation2 + $0x58] sm:$0xff]
  %v278 = vld [vmem:[#allocation2 + $0x60] sm:$0xff]
  %v279 = vld [vmem:[#allocation2 + $0x68] sm:$0xff]
  %v280 = vld [vmem:[#allocation2 + $0x70] sm:$0xff]
  %v281 = vld [vmem:[#allocation2 + $0x78] sm:$0xff]
  %v282 = vld [vmem:[%s0] sm:$0xf]
  %v283 = vld [vmem:[%s0 + $0x4] sm:$0xf]
  %v284 = vld [vmem:[%s0 + $0x8] sm:$0xf]
  %v285 = vld [vmem:[%s0 + $0xc] sm:$0xf]
  %v286 = vld [vmem:[%s0 + $0x10] sm:$0xf]
  %v287 = vld [vmem:[%s0 + $0x14] sm:$0xf]
  %v288 = vld [vmem:[%s0 + $0x18] sm:$0xf]
  %v289 = vld [vmem:[%s0 + $0x1c] sm:$0xf]
  %v290 = vld [vmem:[%s0 + $0x20] sm:$0xf]
  %v291 = vld [vmem:[%s0 + $0x24] sm:$0xf]
  %v292 = vld [vmem:[%s0 + $0x28] sm:$0xf]
  %v293 = vld [vmem:[%s0 + $0x2c] sm:$0xf]
  %v294 = vld [vmem:[%s0 + $0x30] sm:$0xf]
  %v295 = vld [vmem:[%s0 + $0x34] sm:$0xf]
  %v296 = vld [vmem:[%s0 + $0x38] sm:$0xf]
  %v297 = vld [vmem:[%s0 + $0x3c] sm:$0xf]
  %v298 = vld [vmem:[%s1] sm:$0xf]
  %v299 = vld [vmem:[%s1 + $0x4] sm:$0xf]
  %v300 = vld [vmem:[%s1 + $0x8] sm:$0xf]
  %v301 = vld [vmem:[%s1 + $0xc] sm:$0xf]
  %v302 = vld [vmem:[%s1 + $0x10] sm:$0xf]
  %v303 = vld [vmem:[%s1 + $0x14] sm:$0xf]
  %v304 = vld [vmem:[%s1 + $0x18] sm:$0xf]
  %v305 = vld [vmem:[%s1 + $0x1c] sm:$0xf]
  %v306 = vld [vmem:[%s1 + $0x20] sm:$0xf]
  %v307 = vld [vmem:[%s1 + $0x24] sm:$0xf]
  %v308 = vld [vmem:[%s1 + $0x28] sm:$0xf]
  %v309 = vld [vmem:[%s1 + $0x2c] sm:$0xf]
  %v310 = vld [vmem:[%s1 + $0x30] sm:$0xf]
  %v311 = vld [vmem:[%s1 + $0x34] sm:$0xf]
  %v312 = vld [vmem:[%s1 + $0x38] sm:$0xf]
  %v313 = vld [vmem:[%s1 + $0x3c] sm:$0xf]
  %v330 = vunpack.c.l.b16 %v282
  %v331 = vunpack.c.l.b16 %v283
  %v332 = vunpack.c.l.b16 %v284
  %v333 = vunpack.c.l.b16 %v285
  %v334 = vunpack.c.l.b16 %v286
  %v335 = vunpack.c.l.b16 %v287
  %v336 = vunpack.c.l.b16 %v288
  %v337 = vunpack.c.l.b16 %v289
  %v338 = vunpack.c.l.b16 %v290
  %v339 = vunpack.c.l.b16 %v291
  %v340 = vunpack.c.l.b16 %v292
  %v341 = vunpack.c.l.b16 %v293
  %v342 = vunpack.c.l.b16 %v294
  %v343 = vunpack.c.l.b16 %v295
  %v344 = vunpack.c.l.b16 %v296
  %v345 = vunpack.c.l.b16 %v297
  %v346 = vpack.c.b16 %v331, %v330
  %v347 = vpack.c.b16 %v333, %v332
  %v348 = vpack.c.b16 %v335, %v334
  %v349 = vpack.c.b16 %v337, %v336
  %v350 = vpack.c.b16 %v339, %v338
  %v351 = vpack.c.b16 %v341, %v340
  %v352 = vpack.c.b16 %v343, %v342
  %v353 = vpack.c.b16 %v345, %v344
  %v378 = vunpack.c.l.b16 %v298
  %v379 = vunpack.c.l.b16 %v299
  %v380 = vunpack.c.l.b16 %v300
  %v381 = vunpack.c.l.b16 %v301
  %v382 = vunpack.c.l.b16 %v302
  %v383 = vunpack.c.l.b16 %v303
  %v384 = vunpack.c.l.b16 %v304
  %v385 = vunpack.c.l.b16 %v305
  %v386 = vunpack.c.l.b16 %v306
  %v387 = vunpack.c.l.b16 %v307
  %v388 = vunpack.c.l.b16 %v308
  %v389 = vunpack.c.l.b16 %v309
  %v390 = vunpack.c.l.b16 %v310
  %v391 = vunpack.c.l.b16 %v311
  %v392 = vunpack.c.l.b16 %v312
  %v393 = vunpack.c.l.b16 %v313
  %v394 = vpack.c.b16 %v379, %v378
  %v395 = vpack.c.b16 %v381, %v380
  %v396 = vpack.c.b16 %v383, %v382
  %v397 = vpack.c.b16 %v385, %v384
  %v398 = vpack.c.b16 %v387, %v386
  %v399 = vpack.c.b16 %v389, %v388
  %v400 = vpack.c.b16 %v391, %v390
  %v401 = vpack.c.b16 %v393, %v392
  %410 = vmatprep.subr.bf16.mxu0 0
  %411 = vmatpush1.bf16.msra.mxu0 %v394
  %412 = vmatprep.subr.bf16.mxu0 0
  %413 = vmatpush1.bf16.msra.mxu0 %v395
  %414 = vmatprep.subr.bf16.mxu0 0
  %415 = vmatpush1.bf16.msra.mxu0 %v396
  %416 = vmatprep.subr.bf16.mxu0 0
  %417 = vmatpush1.bf16.msra.mxu0 %v397
  %418 = vmatprep.subr.bf16.mxu0 0
  %419 = vmatpush1.bf16.msra.mxu0 %v398
  %420 = vmatprep.subr.bf16.mxu0 0
  %421 = vmatpush1.bf16.msra.mxu0 %v399
  %422 = vmatprep.subr.bf16.mxu0 0
  %423 = vmatpush1.bf16.msra.mxu0 %v400
  %424 = vmatprep.subr.bf16.mxu0 0
  %425 = vmatpush1.bf16.msra.mxu0 %v401
  %426 = vmatprep.subr.bf16.mxu0 0
  %427 = vmatpush1.bf16.msra.mxu0 0
  %428 = vmatprep.subr.bf16.mxu0 0
  %429 = vmatpush1.bf16.msra.mxu0 0
  %430 = vmatprep.subr.bf16.mxu0 0
  %431 = vmatpush1.bf16.msra.mxu0 0
  %432 = vmatprep.subr.bf16.mxu0 0
  %433 = vmatpush1.bf16.msra.mxu0 0
  %434 = vmatprep.subr.bf16.mxu0 0
  %435 = vmatpush1.bf16.msra.mxu0 0
  %436 = vmatprep.subr.bf16.mxu0 0
  %437 = vmatpush1.bf16.msra.mxu0 0
  %438 = vmatprep.subr.bf16.mxu0 0
  %439 = vmatpush1.bf16.msra.mxu0 0
  %440 = vmatprep.subr.bf16.mxu0 0
  %441 = vmatpush1.bf16.msra.mxu0 0
  %442 = vmatprep.mubr.bf16.mxu0 0
  %443 = vmatmul.mubr.bf16.gmra.mrb[0].mxu0 %v346
  %v444 = vpop.f32.mrb[0].mxu0
  %v445 = vadd.f32 0.0, %v444
  %v446 = vpop.f32.mrb[0].mxu0
  %v447 = vpop.f32.mrb[0].mxu0
  %v448 = vadd.f32 0.0, %v447
  %v449 = vpop.f32.mrb[0].mxu0
  %450 = vmatprep.mubr.bf16.mxu0 0
  %451 = vmatmul.mubr.bf16.gmra.mrb[0].mxu0 %v347
  %v452 = vpop.f32.mrb[0].mxu0
  %v453 = vadd.f32 0.0, %v452
  %v454 = vpop.f32.mrb[0].mxu0
  %v455 = vpop.f32.mrb[0].mxu0
  %v456 = vadd.f32 0.0, %v455
  %v457 = vpop.f32.mrb[0].mxu0
  %458 = vmatprep.mubr.bf16.mxu0 0
  %459 = vmatmul.mubr.bf16.gmra.mrb[0].mxu0 %v348
  %v460 = vpop.f32.mrb[0].mxu0
  %v461 = vadd.f32 0.0, %v460
  %v462 = vpop.f32.mrb[0].mxu0
  %v463 = vpop.f32.mrb[0].mxu0
  %v464 = vadd.f32 0.0, %v463
  %v465 = vpop.f32.mrb[0].mxu0
  %466 = vmatprep.mubr.bf16.mxu0 0
  %467 = vmatmul.mubr.bf16.gmra.mrb[0].mxu0 %v349
  %v468 = vpop.f32.mrb[0].mxu0
  %v469 = vadd.f32 0.0, %v468
  %v470 = vpop.f32.mrb[0].mxu0
  %v471 = vpop.f32.mrb[0].mxu0
  %v472 = vadd.f32 0.0, %v471
  %v473 = vpop.f32.mrb[0].mxu0
  %474 = vmatprep.mubr.bf16.mxu0 0
  %475 = vmatmul.mubr.bf16.gmra.mrb[0].mxu0 %v350
  %v476 = vpop.f32.mrb[0].mxu0
  %v477 = vadd.f32 0.0, %v476
  %v478 = vpop.f32.mrb[0].mxu0
  %v479 = vpop.f32.mrb[0].mxu0
  %v480 = vadd.f32 0.0, %v479
  %v481 = vpop.f32.mrb[0].mxu0
  %482 = vmatprep.mubr.bf16.mxu0 0
  %483 = vmatmul.mubr.bf16.gmra.mrb[0].mxu0 %v351
  %v484 = vpop.f32.mrb[0].mxu0
  %v485 = vadd.f32 0.0, %v484
  %v486 = vpop.f32.mrb[0].mxu0
  %v487 = vpop.f32.mrb[0].mxu0
  %v488 = vadd.f32 0.0, %v487
  %v489 = vpop.f32.mrb[0].mxu0
  %490 = vmatprep.mubr.bf16.mxu0 0
  %491 = vmatmul.mubr.bf16.gmra.mrb[0].mxu0 %v352
  %v492 = vpop.f32.mrb[0].mxu0
  %v493 = vadd.f32 0.0, %v492
  %v494 = vpop.f32.mrb[0].mxu0
  %v495 = vpop.f32.mrb[0].mxu0
  %v496 = vadd.f32 0.0, %v495
  %v497 = vpop.f32.mrb[0].mxu0
  %498 = vmatprep.mubr.bf16.mxu0 0
  %499 = vmatmul.mubr.bf16.gmra.mrb[0].mxu0 %v353
  %v500 = vpop.f32.mrb[0].mxu0
  %v501 = vadd.f32 0.0, %v500
  %v502 = vpop.f32.mrb[0].mxu0
  %v503 = vpop.f32.mrb[0].mxu0
  %v504 = vadd.f32 0.0, %v503
  %v505 = vpop.f32.mrb[0].mxu0
  %506 = vdwg.mxu0
  %v507 = vadd.f32 %v266, %v445
  %v508 = vadd.f32 %v267, %v448
  %v509 = vadd.f32 %v268, %v453
  %v510 = vadd.f32 %v269, %v456
  %v511 = vadd.f32 %v270, %v461
  %v512 = vadd.f32 %v271, %v464
  %v513 = vadd.f32 %v272, %v469
  %v514 = vadd.f32 %v273, %v472
  %v515 = vadd.f32 %v274, %v477
  %v516 = vadd.f32 %v275, %v480
  %v517 = vadd.f32 %v276, %v485
  %v518 = vadd.f32 %v277, %v488
  %v519 = vadd.f32 %v278, %v493
  %v520 = vadd.f32 %v279, %v496
  %v521 = vadd.f32 %v280, %v501
  %v522 = vadd.f32 %v281, %v504
  %523 = vst [vmem:[#allocation2] sm:$0xff] %v507
  %524 = vst [vmem:[#allocation2 + $0x8] sm:$0xff] %v508
  %525 = vst [vmem:[#allocation2 + $0x10] sm:$0xff] %v509
  %526 = vst [vmem:[#allocation2 + $0x18] sm:$0xff] %v510
  %527 = vst [vmem:[#allocation2 + $0x20] sm:$0xff] %v511
  %528 = vst [vmem:[#allocation2 + $0x28] sm:$0xff] %v512
  %529 = vst [vmem:[#allocation2 + $0x30] sm:$0xff] %v513
  %530 = vst [vmem:[#allocation2 + $0x38] sm:$0xff] %v514
  %531 = vst [vmem:[#allocation2 + $0x40] sm:$0xff] %v515
  %532 = vst [vmem:[#allocation2 + $0x48] sm:$0xff] %v516
  %533 = vst [vmem:[#allocation2 + $0x50] sm:$0xff] %v517
  %534 = vst [vmem:[#allocation2 + $0x58] sm:$0xff] %v518
  %535 = vst [vmem:[#allocation2 + $0x60] sm:$0xff] %v519
  %536 = vst [vmem:[#allocation2 + $0x68] sm:$0xff] %v520
  %537 = vst [vmem:[#allocation2 + $0x70] sm:$0xff] %v521
  %538 = vst [vmem:[#allocation2 + $0x78] sm:$0xff] %v522
  // Predicated region
  $region26: #{bottleneck_forward.5} parent=0 // pred_check
    %p539 = pneg %p21
  $region27: #{bottleneck_forward.5} parent=0 // pred_check_branch
    %541 = sbr.rel (%p539) target = $region29
  $region28: #{bottleneck_forward.5} parent=0 // pred_region
    %v542 = vld [vmem:[#allocation2] sm:$0xff]
    %v543 = vld [vmem:[#allocation2 + $0x8] sm:$0xff]
    %v544 = vld [vmem:[#allocation2 + $0x10] sm:$0xff]
    %v545 = vld [vmem:[#allocation2 + $0x18] sm:$0xff]
    %v546 = vld [vmem:[#allocation2 + $0x20] sm:$0xff]
    %v547 = vld [vmem:[#allocation2 + $0x28] sm:$0xff]
    %v548 = vld [vmem:[#allocation2 + $0x30] sm:$0xff]
    %v549 = vld [vmem:[#allocation2 + $0x38] sm:$0xff]
    %v550 = vld [vmem:[#allocation2 + $0x40] sm:$0xff]
    %v551 = vld [vmem:[#allocation2 + $0x48] sm:$0xff]
    %v552 = vld [vmem:[#allocation2 + $0x50] sm:$0xff]
    %v553 = vld [vmem:[#allocation2 + $0x58] sm:$0xff]
    %v554 = vld [vmem:[#allocation2 + $0x60] sm:$0xff]
    %v555 = vld [vmem:[#allocation2 + $0x68] sm:$0xff]
    %v556 = vld [vmem:[#allocation2 + $0x70] sm:$0xff]
    %v557 = vld [vmem:[#allocation2 + $0x78] sm:$0xff]
    %v558 = vld [vmem:[%s4] sm:$0x1]
    %v560 = vlaneseq
    %v561 = vshrl.u32 %v560, 7
    %v562 = vsub.s32 0, %v561
    %v563 = vrot.slane %v558, %v562
    %v565 = vadd.f32 %v542, %v563
    %v566 = vadd.f32 %v543, %v563
    %v567 = vadd.f32 %v544, %v563
    %v568 = vadd.f32 %v545, %v563
    %v569 = vadd.f32 %v546, %v563
    %v570 = vadd.f32 %v547, %v563
    %v571 = vadd.f32 %v548, %v563
    %v572 = vadd.f32 %v549, %v563
    %v573 = vadd.f32 %v550, %v563
    %v574 = vadd.f32 %v551, %v563
    %v575 = vadd.f32 %v552, %v563
    %v576 = vadd.f32 %v553, %v563
    %v577 = vadd.f32 %v554, %v563
    %v578 = vadd.f32 %v555, %v563
    %v579 = vadd.f32 %v556, %v563
    %v580 = vadd.f32 %v557, %v563
    %v581 = vmax.f32 %v565, 0.0
    %v582 = vmax.f32 %v566, 0.0
    %v583 = vmax.f32 %v567, 0.0
    %v584 = vmax.f32 %v568, 0.0
    %v585 = vmax.f32 %v569, 0.0
    %v586 = vmax.f32 %v570, 0.0
    %v587 = vmax.f32 %v571, 0.0
    %v588 = vmax.f32 %v572, 0.0
    %v589 = vmax.f32 %v573, 0.0
    %v590 = vmax.f32 %v574, 0.0
    %v591 = vmax.f32 %v575, 0.0
    %v592 = vmax.f32 %v576, 0.0
    %v593 = vmax.f32 %v577, 0.0
    %v594 = vmax.f32 %v578, 0.0
    %v595 = vmax.f32 %v579, 0.0
    %v596 = vmax.f32 %v580, 0.0
    %597 = vst [vmem:[%s5] sm:$0xff] %v581
    %598 = vst [vmem:[%s5 + $0x8] sm:$0xff] %v582
    %599 = vst [vmem:[%s5 + $0x10] sm:$0xff] %v583
    %600 = vst [vmem:[%s5 + $0x18] sm:$0xff] %v584
    %601 = vst [vmem:[%s5 + $0x20] sm:$0xff] %v585
    %602 = vst [vmem:[%s5 + $0x28] sm:$0xff] %v586
    %603 = vst [vmem:[%s5 + $0x30] sm:$0xff] %v587
    %604 = vst [vmem:[%s5 + $0x38] sm:$0xff] %v588
    %605 = vst [vmem:[%s5 + $0x40] sm:$0xff] %v589
    %606 = vst [vmem:[%s5 + $0x48] sm:$0xff] %v590
    %607 = vst [vmem:[%s5 + $0x50] sm:$0xff] %v591
    %608 = vst [vmem:[%s5 + $0x58] sm:$0xff] %v592
    %609 = vst [vmem:[%s5 + $0x60] sm:$0xff] %v593
    %610 = vst [vmem:[%s5 + $0x68] sm:$0xff] %v594
    %611 = vst [vmem:[%s5 + $0x70] sm:$0xff] %v595
    %612 = vst [vmem:[%s5 + $0x78] sm:$0xff] %v596
  $region29: #{bottleneck_forward.5} parent=0 // pred_fallthru
    _
  // Predicated region
  $region30: #{bottleneck_forward.5} parent=0 // pred_check
    _
  $region31: #{bottleneck_forward.5} parent=0 // pred_check_branch
    %614 = sbr.rel (0) target = $region33
  $region32: #{bottleneck_forward.5} parent=0 // pred_region
    _
  $region33: #{bottleneck_forward.5} parent=0 // pred_fallthru
    _
  // Predicated region
  $region34: #{bottleneck_forward.5} parent=0 // pred_check
    _
  $region35: #{bottleneck_forward.5} parent=0 // pred_check_branch
    %616 = sbr.rel (0) target = $region37
  $region36: #{bottleneck_forward.5} parent=0 // pred_region
    _
  $region37: #{bottleneck_forward.5} parent=0 // pred_fallthru
    _

// kernel: bottleneck_forward.4
$region0: #{bottleneck_forward.4}
  #allocation0 [shape = 'u32[]', space=smem, size = 0x4, offset = 0x4, fixed_abs, tag = 'smem constant byte address 0x4 - core index']
  #allocation1 [shape = 'u32[144,128]{1,0:T(1,128)}', space=vmem, size = 0x12000, scoped, tag = 'internal scratch']
  #allocation2 [shape = 'f32[128,128]{1,0:T(8,128)}', space=vmem, size = 0x10000, scoped, tag = 'scratch operand']
  %s0 = inlined_call_operand.vmem [shape: bf16[128,1152], index: 0, kind: input, shape index: {}]
  %s1 = inlined_call_operand.vmem [shape: bf16[1152,128], index: 1, kind: input, shape index: {}]
  %s2 = inlined_call_operand.vmem [shape: f32[1,128], index: 2, kind: input, shape index: {}]
  %s3 = inlined_call_operand.vmem [shape: bf16[128,128], index: 3, kind: output, shape index: {}]
  %s4 = sld [smem:[#allocation0]]
  $region94: #{bottleneck_forward.4} parent=0
    _
  %s6 = ssub.s32 1, %s4
  %s7 = scalar_select 0, %s6, %s4
  $region1: #{bottleneck_forward.4} parent=0
    #allocation3 [shape = 'u8[65536]{0}', space=vmem, size = 0x10000, scoped, tag = 'input window, operand 0']
    loop: start=0, step=1, limit=11
    $region2: #{bottleneck_forward.4} parent=1 // loop_pre_header
      _
    $region3: #{bottleneck_forward.4} parent=1 // loop_header
      %s9 = sphi 0, %s13
      %p10 = scmp.ge.s32.totalorder %s9, 11
      %s16 = sphi 0, %s35
      %s17 = sphi 0, %s31
      %s18 = sphi 0, %s27
      %s19 = sphi 0, %s16
      %s20 = sphi 0, %s17
      %s21 = sphi 0, %s18
      %s22 = sphi 0, %s19
      %s23 = sphi 0, %s20
      %s24 = sphi 0, %s21
      %s40 = sphi 0, %s42
      %s43 = sphi 0, %s40
      %s44 = sphi 0, %s43
      %s60 = sphi 0, %s44
      %s68 = sphi 0, %s70
      %s71 = sphi 0, %s68
      %s72 = sphi 0, %s71
      %s88 = sphi 0, %s72
      %s94 = sphi 0, %s96
      %s97 = sphi 0, %s94
      %s98 = sphi 0, %s97
      %s114 = sphi 0, %s98
      %s122 = sphi 0, %s124
      %s125 = sphi 0, %s122
      %s126 = sphi 0, %s125
      %s142 = sphi 0, %s126
    $region4: #{bottleneck_forward.4} parent=1 // loop_header_branch
      %12 = sbr.rel (%p10) target = $region8
    $region5: #{bottleneck_forward.4} parent=1 // loop_body
      %s14 = ssub.s32 %s9, 1
      %s15 = ssub.s32 %s9, 2
      %s25 = sadd.s32 1, %s18
      %p26 = scmp.ge.s32.totalorder %s25, 9
      %s27 = scalar_select %p26, 0, %s25
      %s28 = sadd.s32 1, %s17
      %s29 = scalar_select %p26, %s28, %s17
      %p30 = scmp.ge.s32.totalorder %s29, 1
      %s31 = scalar_select %p30, 0, %s29
      %s32 = sadd.s32 1, %s16
      %s33 = scalar_select %p30, %s32, %s16
      %p34 = scmp.ge.s32.totalorder %s33, 1
      %s35 = scalar_select %p34, 0, %s33
      %s36 = ssub.s32 %s16, %s35
      %s37 = ssub.s32 %s18, %s27
      %s38 = sor.u32 %s36, %s37
      %p39 = scmp.eq.s32.totalorder %s38, 0
      %s41 = sadd.s32 %s40, 1
      %s42 = scalar_select %p39, %s40, %s41
      %p45 = pneg %p39
      %p46 = scmp.eq.s32.totalorder %s9, 8
      %p47 = por %p45, %p46
      %p48 = scmp.ne.s32.totalorder %s40, %s43
      %p49 = scmp.eq.s32.totalorder %s9, 0
      %p50 = por %p48, %p49
      %p51 = scmp.ne.s32.totalorder %s40, %s43
      %p52 = scmp.eq.s32.totalorder %s14, 8
      %p53 = por %p51, %p52
      %p54 = scmp.ne.s32.totalorder %s43, %s44
      %p55 = scmp.eq.s32.totalorder %s14, 0
      %p56 = por %p54, %p55
      %p57 = scmp.ne.s32.totalorder %s43, %s44
      %p58 = scmp.eq.s32.totalorder %s15, 8
      %p59 = por %p57, %p58
      %p61 = scmp.ne.s32.totalorder %s44, %s60
      %p62 = scmp.eq.s32.totalorder %s15, 0
      %p63 = por %p61, %p62
      %s64 = ssub.s32 %s18, %s27
      %s65 = ssub.s32 %s17, %s31
      %s66 = sor.u32 %s64, %s65
      %p67 = scmp.eq.s32.totalorder %s66, 0
      %s69 = sadd.s32 %s68, 1
      %s70 = scalar_select %p67, %s68, %s69
      %p73 = pneg %p67
      %p74 = scmp.eq.s32.totalorder %s9, 8
      %p75 = por %p73, %p74
      %p76 = scmp.ne.s32.totalorder %s68, %s71
      %p77 = scmp.eq.s32.totalorder %s9, 0
      %p78 = por %p76, %p77
      %p79 = scmp.ne.s32.totalorder %s68, %s71
      %p80 = scmp.eq.s32.totalorder %s14, 8
      %p81 = por %p79, %p80
      %p82 = scmp.ne.s32.totalorder %s71, %s72
      %p83 = scmp.eq.s32.totalorder %s14, 0
      %p84 = por %p82, %p83
      %p85 = scmp.ne.s32.totalorder %s71, %s72
      %p86 = scmp.eq.s32.totalorder %s15, 8
      %p87 = por %p85, %p86
      %p89 = scmp.ne.s32.totalorder %s72, %s88
      %p90 = scmp.eq.s32.totalorder %s15, 0
      %p91 = por %p89, %p90
      %s92 = ssub.s32 %s17, %s31
      %p93 = scmp.eq.s32.totalorder %s92, 0
      %s95 = sadd.s32 %s94, 1
      %s96 = scalar_select %p93, %s94, %s95
      %p99 = pneg %p93
      %p100 = scmp.eq.s32.totalorder %s9, 8
      %p101 = por %p99, %p100
      %p102 = scmp.ne.s32.totalorder %s94, %s97
      %p103 = scmp.eq.s32.totalorder %s9, 0
      %p104 = por %p102, %p103
      %p105 = scmp.ne.s32.totalorder %s94, %s97
      %p106 = scmp.eq.s32.totalorder %s14, 8
      %p107 = por %p105, %p106
      %p108 = scmp.ne.s32.totalorder %s97, %s98
      %p109 = scmp.eq.s32.totalorder %s14, 0
      %p110 = por %p108, %p109
      %p111 = scmp.ne.s32.totalorder %s97, %s98
      %p112 = scmp.eq.s32.totalorder %s15, 8
      %p113 = por %p111, %p112
      %p115 = scmp.ne.s32.totalorder %s98, %s114
      %p116 = scmp.eq.s32.totalorder %s15, 0
      %p117 = por %p115, %p116
      %s118 = ssub.s32 %s16, %s35
      %s119 = ssub.s32 %s17, %s31
      %s120 = sor.u32 %s118, %s119
      %p121 = scmp.eq.s32.totalorder %s120, 0
      %s123 = sadd.s32 %s122, 1
      %s124 = scalar_select %p121, %s122, %s123
      %p127 = pneg %p121
      %p128 = scmp.eq.s32.totalorder %s9, 8
      %p129 = por %p127, %p128
      %p130 = scmp.ne.s32.totalorder %s122, %s125
      %p131 = scmp.eq.s32.totalorder %s9, 0
      %p132 = por %p130, %p131
      %p133 = scmp.ne.s32.totalorder %s122, %s125
      %p134 = scmp.eq.s32.totalorder %s14, 8
      %p135 = por %p133, %p134
      %p136 = scmp.ne.s32.totalorder %s125, %s126
      %p137 = scmp.eq.s32.totalorder %s14, 0
      %p138 = por %p136, %p137
      %p139 = scmp.ne.s32.totalorder %s125, %s126
      %p140 = scmp.eq.s32.totalorder %s15, 8
      %p141 = por %p139, %p140
      %p143 = scmp.ne.s32.totalorder %s126, %s142
      %p144 = scmp.eq.s32.totalorder %s15, 0
      %p145 = por %p143, %p144
      %p146 = scmp.le.s32.totalorder 1, %s9
      %p147 = scmp.lt.s32.totalorder %s9, 10
      %p148 = pnand %p146, %p147
      %p149 = pneg %p148
      // Predicated region
      $region9: #{bottleneck_forward.4} parent=5 // pred_check
        _
      $region10: #{bottleneck_forward.4} parent=5 // pred_check_branch
        %151 = sbr.rel (%p148) target = $region12
      $region11: #{bottleneck_forward.4} parent=5 // pred_region
        %s152 = ssub.s32 %s9, 1
        // Predicated region
        $region13: #{bottleneck_forward.4} parent=11 // pred_check
          %p153 = pneg %p110
        $region14: #{bottleneck_forward.4} parent=11 // pred_check_branch
          %155 = sbr.rel (%p153) target = $region16
        $region15: #{bottleneck_forward.4} parent=11 // pred_region
          %p156 = scmp.lt.s32.totalorder %s20, 0
          %s157 = scalar_select %p156, %s20, 0
          %s158 = scalar_lea.vmem %s2, %s157
        $region16: #{bottleneck_forward.4} parent=11 // pred_fallthru
          _
      $region12: #{bottleneck_forward.4} parent=5 // pred_fallthru
        _
      %p159 = scmp.lt.s32.totalorder %s9, 9
      // Predicated region
      $region17: #{bottleneck_forward.4} parent=5 // pred_check
        %p160 = pneg %p159
      $region18: #{bottleneck_forward.4} parent=5 // pred_check_branch
        %162 = sbr.rel (%p160) target = $region20
      $region19: #{bottleneck_forward.4} parent=5 // pred_region
        // Predicated region
        $region21: #{bottleneck_forward.4} parent=19 // pred_check
          %p163 = pneg %p50
        $region22: #{bottleneck_forward.4} parent=19 // pred_check_branch
          %165 = sbr.rel (%p163) target = $region24
        $region23: #{bottleneck_forward.4} parent=19 // pred_region
          %s166 = sand.u32 %s40, 1
          %s167 = sand.u32 %s40, 1
          %s168 = smul.addr %s167, 64
          %s169 = scalar_lea.vmem [#allocation3], %s168
          %s170 = smul.u32 16, %s16
          %s171 = smul.addr %s170, 9
          %s172 = sadd.s32 %s18, %s171
          %s173 = smul.addr %s172, 4
          %s174 = scalar_lea.vmem %s0, %s173
          // Predicated region
          $region25: #{bottleneck_forward.4} parent=23 // pred_check
            _
          $region26: #{bottleneck_forward.4} parent=23 // pred_check_branch
            %176 = sbr.rel (0) target = $region28
          $region27: #{bottleneck_forward.4} parent=23 // pred_region
            // Predicated region
            $region29: #{bottleneck_forward.4} parent=27 // pred_check
              _
            $region30: #{bottleneck_forward.4} parent=27 // pred_check_branch
              %178 = sbr.rel target = $region32
            $region31: #{bottleneck_forward.4} parent=27 // pred_region
              // Predicated region
              $region44: #{bottleneck_forward.4} parent=31 // pred_check
                _
              $region45: #{bottleneck_forward.4} parent=31 // pred_check_branch
                %223 = sbr.rel (0) target = $region47
              $region46: #{bottleneck_forward.4} parent=31 // pred_region
                loop: start=0, step=1, limit=1
                $region48: #{bottleneck_forward.4} parent=46 // loop_pre_header
                  _
                $region49: #{bottleneck_forward.4} parent=46 // loop_header
                  %s225 = sphi 0, %s229
                  %p226 = scmp.ge.s32.totalorder %s225, 1
                  %s230 = sphi %s174, %s174
                  %s231 = sphi %s169, %s169
                $region50: #{bottleneck_forward.4} parent=46 // loop_header_branch
                  %228 = sbr.rel (%p226) target = $region54
                $region51: #{bottleneck_forward.4} parent=46 // loop_body
                  _
                $region52: #{bottleneck_forward.4} parent=46 // loop_footer
                  %s229 = sadd.s32 1, %s225
                $region53: #{bottleneck_forward.4} parent=46 // loop_footer_branch
                  %224 = sbr.rel target = $region49
                $region54: #{bottleneck_forward.4} parent=46 // loop_exit
                  _
                loop: start=0, step=1, limit=1
                $region55: #{bottleneck_forward.4} parent=46 // loop_pre_header
                  _
                $region56: #{bottleneck_forward.4} parent=46 // loop_header
                  %s234 = sphi 0, %s238
                  %p235 = scmp.ge.s32.totalorder %s234, 1
                  %s239 = sphi %s174, %s174
                  %s240 = sphi %s169, %s169
                $region57: #{bottleneck_forward.4} parent=46 // loop_header_branch
                  %237 = sbr.rel (%p235) target = $region61
                $region58: #{bottleneck_forward.4} parent=46 // loop_body
                  %v241 = vld [vmem:[%s239] sm:$0xf]
                  %242 = vst [vmem:[%s240] sm:$0xf] %v241
                  %v243 = vld [vmem:[%s239 + $0x24] sm:$0xf]
                  %244 = vst [vmem:[%s240 + $0x4] sm:$0xf] %v243
                  %v245 = vld [vmem:[%s239 + $0x48] sm:$0xf]
                  %246 = vst [vmem:[%s240 + $0x8] sm:$0xf] %v245
                  %v247 = vld [vmem:[%s239 + $0x6c] sm:$0xf]
                  %248 = vst [vmem:[%s240 + $0xc] sm:$0xf] %v247
                  %v249 = vld [vmem:[%s239 + $0x90] sm:$0xf]
                  %250 = vst [vmem:[%s240 + $0x10] sm:$0xf] %v249
                  %v251 = vld [vmem:[%s239 + $0xb4] sm:$0xf]
                  %252 = vst [vmem:[%s240 + $0x14] sm:$0xf] %v251
                  %v253 = vld [vmem:[%s239 + $0xd8] sm:$0xf]
                  %254 = vst [vmem:[%s240 + $0x18] sm:$0xf] %v253
                  %v255 = vld [vmem:[%s239 + $0xfc] sm:$0xf]
                  %256 = vst [vmem:[%s240 + $0x1c] sm:$0xf] %v255
                  %v257 = vld [vmem:[%s239 + $0x120] sm:$0xf]
                  %258 = vst [vmem:[%s240 + $0x20] sm:$0xf] %v257
                  %v259 = vld [vmem:[%s239 + $0x144] sm:$0xf]
                  %260 = vst [vmem:[%s240 + $0x24] sm:$0xf] %v259
                  %v261 = vld [vmem:[%s239 + $0x168] sm:$0xf]
                  %262 = vst [vmem:[%s240 + $0x28] sm:$0xf] %v261
                  %v263 = vld [vmem:[%s239 + $0x18c] sm:$0xf]
                  %264 = vst [vmem:[%s240 + $0x2c] sm:$0xf] %v263
                  %v265 = vld [vmem:[%s239 + $0x1b0] sm:$0xf]
                  %266 = vst [vmem:[%s240 + $0x30] sm:$0xf] %v265
                  %v267 = vld [vmem:[%s239 + $0x1d4] sm:$0xf]
                  %268 = vst [vmem:[%s240 + $0x34] sm:$0xf] %v267
                  %v269 = vld [vmem:[%s239 + $0x1f8] sm:$0xf]
                  %270 = vst [vmem:[%s240 + $0x38] sm:$0xf] %v269
                  %v271 = vld [vmem:[%s239 + $0x21c] sm:$0xf]
                  %272 = vst [vmem:[%s240 + $0x3c] sm:$0xf] %v271
                $region59: #{bottleneck_forward.4} parent=46 // loop_footer
                  %s238 = sadd.s32 1, %s234
                $region60: #{bottleneck_forward.4} parent=46 // loop_footer_branch
                  %233 = sbr.rel target = $region56
                $region61: #{bottleneck_forward.4} parent=46 // loop_exit
                  _
              $region47: #{bottleneck_forward.4} parent=31 // pred_fallthru
                _
            $region32: #{bottleneck_forward.4} parent=27 // pred_fallthru
              _
            // Predicated region
            $region33: #{bottleneck_forward.4} parent=27 // pred_check
              _
            $region34: #{bottleneck_forward.4} parent=27 // pred_check_branch
              %180 = sbr.rel (0) target = $region36
            $region35: #{bottleneck_forward.4} parent=27 // pred_region
              loop: start=0, step=1, limit=1
              $region37: #{bottleneck_forward.4} parent=35 // loop_pre_header
                _
              $region38: #{bottleneck_forward.4} parent=35 // loop_header
                %s183 = sphi 0, %s187
                %p184 = scmp.ge.s32.totalorder %s183, 1
                %s188 = sphi %s174, %s174
                %s189 = sphi %s169, %s169
              $region39: #{bottleneck_forward.4} parent=35 // loop_header_branch
                %186 = sbr.rel (%p184) target = $region43
              $region40: #{bottleneck_forward.4} parent=35 // loop_body
                %v190 = vld [vmem:[%s188] sm:$0xf]
                %191 = vst [vmem:[%s189] sm:$0xf] %v190
                %v192 = vld [vmem:[%s188 + $0x24] sm:$0xf]
                %193 = vst [vmem:[%s189 + $0x4] sm:$0xf] %v192
                %v194 = vld [vmem:[%s188 + $0x48] sm:$0xf]
                %195 = vst [vmem:[%s189 + $0x8] sm:$0xf] %v194
                %v196 = vld [vmem:[%s188 + $0x6c] sm:$0xf]
                %197 = vst [vmem:[%s189 + $0xc] sm:$0xf] %v196
                %v198 = vld [vmem:[%s188 + $0x90] sm:$0xf]
                %199 = vst [vmem:[%s189 + $0x10] sm:$0xf] %v198
                %v200 = vld [vmem:[%s188 + $0xb4] sm:$0xf]
                %201 = vst [vmem:[%s189 + $0x14] sm:$0xf] %v200
                %v202 = vld [vmem:[%s188 + $0xd8] sm:$0xf]
                %203 = vst [vmem:[%s189 + $0x18] sm:$0xf] %v202
                %v204 = vld [vmem:[%s188 + $0xfc] sm:$0xf]
                %205 = vst [vmem:[%s189 + $0x1c] sm:$0xf] %v204
                %v206 = vld [vmem:[%s188 + $0x120] sm:$0xf]
                %207 = vst [vmem:[%s189 + $0x20] sm:$0xf] %v206
                %v208 = vld [vmem:[%s188 + $0x144] sm:$0xf]
                %209 = vst [vmem:[%s189 + $0x24] sm:$0xf] %v208
                %v210 = vld [vmem:[%s188 + $0x168] sm:$0xf]
                %211 = vst [vmem:[%s189 + $0x28] sm:$0xf] %v210
                %v212 = vld [vmem:[%s188 + $0x18c] sm:$0xf]
                %213 = vst [vmem:[%s189 + $0x2c] sm:$0xf] %v212
                %v214 = vld [vmem:[%s188 + $0x1b0] sm:$0xf]
                %215 = vst [vmem:[%s189 + $0x30] sm:$0xf] %v214
                %v216 = vld [vmem:[%s188 + $0x1d4] sm:$0xf]
                %217 = vst [vmem:[%s189 + $0x34] sm:$0xf] %v216
                %v218 = vld [vmem:[%s188 + $0x1f8] sm:$0xf]
                %219 = vst [vmem:[%s189 + $0x38] sm:$0xf] %v218
                %v220 = vld [vmem:[%s188 + $0x21c] sm:$0xf]
                %221 = vst [vmem:[%s189 + $0x3c] sm:$0xf] %v220
              $region41: #{bottleneck_forward.4} parent=35 // loop_footer
                %s187 = sadd.s32 1, %s183
              $region42: #{bottleneck_forward.4} parent=35 // loop_footer_branch
                %182 = sbr.rel target = $region38
              $region43: #{bottleneck_forward.4} parent=35 // loop_exit
                _
            $region36: #{bottleneck_forward.4} parent=27 // pred_fallthru
              _
          $region28: #{bottleneck_forward.4} parent=23 // pred_fallthru
            _
          %273 = vnop
        $region24: #{bottleneck_forward.4} parent=19 // pred_fallthru
          _
        // Predicated region
        $region62: #{bottleneck_forward.4} parent=19 // pred_check
          %p274 = pneg %p78
        $region63: #{bottleneck_forward.4} parent=19 // pred_check_branch
          %276 = sbr.rel (%p274) target = $region65
        $region64: #{bottleneck_forward.4} parent=19 // pred_region
          %s277 = smul.u32 16, %s18
          %p278 = scmp.lt.s32.totalorder %s277, 143
          %s279 = scalar_select %p278, %s277, 143
          %p280 = scmp.lt.s32.totalorder %s17, 0
          %s281 = scalar_select %p280, %s17, 0
          %s282 = sadd.s32 %s281, %s279
          %s283 = smul.addr %s282, 4
          %s284 = scalar_lea.vmem %s1, %s283
          %s285 = smul.u32 16, %s18
        $region65: #{bottleneck_forward.4} parent=19 // pred_fallthru
          _
      $region20: #{bottleneck_forward.4} parent=5 // pred_fallthru
        _
      %p286 = scmp.le.s32.totalorder 1, %s9
      %p287 = scmp.lt.s32.totalorder %s9, 10
      %p288 = pnand %p286, %p287
      %p289 = pneg %p288
      // Predicated region
      $region66: #{bottleneck_forward.4} parent=5 // pred_check
        _
      $region67: #{bottleneck_forward.4} parent=5 // pred_check_branch
        %291 = sbr.rel (%p288) target = $region69
      $region68: #{bottleneck_forward.4} parent=5 // pred_region
        %s292 = ssub.s32 %s9, 1
        %s293 = sand.u32 %s43, 1
        %s294 = sand.u32 %s43, 1
        %s295 = smul.addr %s294, 64
        %s296 = scalar_lea.vmem [#allocation3], %s295
        // Predicated region
        $region70: #{bottleneck_forward.4} parent=68 // pred_check
          %p297 = pneg %p56
        $region71: #{bottleneck_forward.4} parent=68 // pred_check_branch
          %299 = sbr.rel (%p297) target = $region73
        $region72: #{bottleneck_forward.4} parent=68 // pred_region
          _
        $region73: #{bottleneck_forward.4} parent=68 // pred_fallthru
          _
        %s300 = sand.u32 %s43, 1
        %s301 = sand.u32 %s43, 1
        %s302 = smul.addr %s301, 64
        %s303 = scalar_lea.vmem [#allocation3], %s302
        %p304 = pneg %p56
        %p305 = pneg %p53
        %s306 = smul.u32 16, %s21
        %p307 = scmp.lt.s32.totalorder %s306, 143
        %s308 = scalar_select %p307, %s306, 143
        %p309 = scmp.lt.s32.totalorder %s20, 0
        %s310 = scalar_select %p309, %s20, 0
        %s311 = sadd.s32 %s310, %s308
        %s312 = smul.addr %s311, 4
        %s313 = scalar_lea.vmem %s1, %s312
        %p314 = pneg %p84
        %p315 = pneg %p81
        %p316 = scmp.lt.s32.totalorder %s20, 0
        %s317 = scalar_select %p316, %s20, 0
        %s318 = scalar_lea.vmem %s2, %s317
        %p319 = pneg %p110
        %p320 = pneg %p107
        %p321 = pneg %p138
        %p322 = pneg %p135
        %s323 = smul.u32 16, %s19
        %p324 = scmp.lt.s32.totalorder %s323, 15
        %s325 = scalar_select %p324, %s323, 15
        %p326 = scmp.lt.s32.totalorder %s20, 0
        %s327 = scalar_select %p326, %s20, 0
        %s328 = sadd.s32 %s327, %s325
        %s329 = smul.addr %s328, 4
        %s330 = scalar_lea.vmem %s3, %s329
        %s331 = smul.u32 16, %s19
        %s332 = smul.u32 16, %s21
        %p333 = scmp.lt.s32.totalorder %s332, 143
        %s334 = scalar_select %p333, %s332, 143
        %p335 = scmp.lt.s32.totalorder %s20, 0
        %s336 = scalar_select %p335, %s20, 0
        %s337 = sadd.s32 %s336, %s334
        %s338 = smul.addr %s337, 4
        %s339 = scalar_lea.vmem %s1, %s338
        %s340 = smul.u32 16, %s21
        %p341 = scmp.lt.s32.totalorder %s20, 0
        %s342 = scalar_select %p341, %s20, 0
        %s343 = scalar_lea.vmem %s2, %s342
        %s344 = smul.u32 16, %s19
        %p345 = scmp.lt.s32.totalorder %s344, 15
        %s346 = scalar_select %p345, %s344, 15
        %p347 = scmp.lt.s32.totalorder %s20, 0
        %s348 = scalar_select %p347, %s20, 0
        %s349 = sadd.s32 %s348, %s346
        %s350 = smul.addr %s349, 4
        %s351 = scalar_lea.vmem %s3, %s350
        %s352 = smul.u32 16, %s19
        %p354 = scmp.eq.s32.totalorder %s21, 0
        // Predicated region
        $region74: #{bottleneck_forward.4} parent=68 // pred_check
          %p355 = pneg %p354
        $region75: #{bottleneck_forward.4} parent=68 // pred_check_branch
          %357 = sbr.rel (%p355) target = $region77
        $region76: #{bottleneck_forward.4} parent=68 // pred_region
          %358 = vst [vmem:[#allocation2] sm:$0xff] 0.0
          %359 = vst [vmem:[#allocation2 + $0x8] sm:$0xff] 0.0
          %360 = vst [vmem:[#allocation2 + $0x10] sm:$0xff] 0.0
          %361 = vst [vmem:[#allocation2 + $0x18] sm:$0xff] 0.0
          %362 = vst [vmem:[#allocation2 + $0x20] sm:$0xff] 0.0
          %363 = vst [vmem:[#allocation2 + $0x28] sm:$0xff] 0.0
          %364 = vst [vmem:[#allocation2 + $0x30] sm:$0xff] 0.0
          %365 = vst [vmem:[#allocation2 + $0x38] sm:$0xff] 0.0
          %366 = vst [vmem:[#allocation2 + $0x40] sm:$0xff] 0.0
          %367 = vst [vmem:[#allocation2 + $0x48] sm:$0xff] 0.0
          %368 = vst [vmem:[#allocation2 + $0x50] sm:$0xff] 0.0
          %369 = vst [vmem:[#allocation2 + $0x58] sm:$0xff] 0.0
          %370 = vst [vmem:[#allocation2 + $0x60] sm:$0xff] 0.0
          %371 = vst [vmem:[#allocation2 + $0x68] sm:$0xff] 0.0
          %372 = vst [vmem:[#allocation2 + $0x70] sm:$0xff] 0.0
          %373 = vst [vmem:[#allocation2 + $0x78] sm:$0xff] 0.0
        $region77: #{bottleneck_forward.4} parent=68 // pred_fallthru
          _
        %v374 = vld [vmem:[#allocation2] sm:$0xff]
        %v375 = vld [vmem:[#allocation2 + $0x8] sm:$0xff]
        %v376 = vld [vmem:[#allocation2 + $0x10] sm:$0xff]
        %v377 = vld [vmem:[#allocation2 + $0x18] sm:$0xff]
        %v378 = vld [vmem:[#allocation2 + $0x20] sm:$0xff]
        %v379 = vld [vmem:[#allocation2 + $0x28] sm:$0xff]
        %v380 = vld [vmem:[#allocation2 + $0x30] sm:$0xff]
        %v381 = vld [vmem:[#allocation2 + $0x38] sm:$0xff]
        %v382 = vld [vmem:[#allocation2 + $0x40] sm:$0xff]
        %v383 = vld [vmem:[#allocation2 + $0x48] sm:$0xff]
        %v384 = vld [vmem:[#allocation2 + $0x50] sm:$0xff]
        %v385 = vld [vmem:[#allocation2 + $0x58] sm:$0xff]
        %v386 = vld [vmem:[#allocation2 + $0x60] sm:$0xff]
        %v387 = vld [vmem:[#allocation2 + $0x68] sm:$0xff]
        %v388 = vld [vmem:[#allocation2 + $0x70] sm:$0xff]
        %v389 = vld [vmem:[#allocation2 + $0x78] sm:$0xff]
        %v390 = vld [vmem:[%s296] sm:$0xf]
        %v391 = vld [vmem:[%s296 + $0x4] sm:$0xf]
        %v392 = vld [vmem:[%s296 + $0x8] sm:$0xf]
        %v393 = vld [vmem:[%s296 + $0xc] sm:$0xf]
        %v394 = vld [vmem:[%s296 + $0x10] sm:$0xf]
        %v395 = vld [vmem:[%s296 + $0x14] sm:$0xf]
        %v396 = vld [vmem:[%s296 + $0x18] sm:$0xf]
        %v397 = vld [vmem:[%s296 + $0x1c] sm:$0xf]
        %v398 = vld [vmem:[%s296 + $0x20] sm:$0xf]
        %v399 = vld [vmem:[%s296 + $0x24] sm:$0xf]
        %v400 = vld [vmem:[%s296 + $0x28] sm:$0xf]
        %v401 = vld [vmem:[%s296 + $0x2c] sm:$0xf]
        %v402 = vld [vmem:[%s296 + $0x30] sm:$0xf]
        %v403 = vld [vmem:[%s296 + $0x34] sm:$0xf]
        %v404 = vld [vmem:[%s296 + $0x38] sm:$0xf]
        %v405 = vld [vmem:[%s296 + $0x3c] sm:$0xf]
        %v406 = vld [vmem:[%s339] sm:$0xf]
        %v407 = vld [vmem:[%s339 + $0x4] sm:$0xf]
        %v408 = vld [vmem:[%s339 + $0x8] sm:$0xf]
        %v409 = vld [vmem:[%s339 + $0xc] sm:$0xf]
        %v410 = vld [vmem:[%s339 + $0x10] sm:$0xf]
        %v411 = vld [vmem:[%s339 + $0x14] sm:$0xf]
        %v412 = vld [vmem:[%s339 + $0x18] sm:$0xf]
        %v413 = vld [vmem:[%s339 + $0x1c] sm:$0xf]
        %v414 = vld [vmem:[%s339 + $0x20] sm:$0xf]
        %v415 = vld [vmem:[%s339 + $0x24] sm:$0xf]
        %v416 = vld [vmem:[%s339 + $0x28] sm:$0xf]
        %v417 = vld [vmem:[%s339 + $0x2c] sm:$0xf]
        %v418 = vld [vmem:[%s339 + $0x30] sm:$0xf]
        %v419 = vld [vmem:[%s339 + $0x34] sm:$0xf]
        %v420 = vld [vmem:[%s339 + $0x38] sm:$0xf]
        %v421 = vld [vmem:[%s339 + $0x3c] sm:$0xf]
        %v438 = vunpack.c.l.b16 %v390
        %v439 = vunpack.c.l.b16 %v391
        %v440 = vunpack.c.l.b16 %v392
        %v441 = vunpack.c.l.b16 %v393
        %v442 = vunpack.c.l.b16 %v394
        %v443 = vunpack.c.l.b16 %v395
        %v444 = vunpack.c.l.b16 %v396
        %v445 = vunpack.c.l.b16 %v397
        %v446 = vunpack.c.l.b16 %v398
        %v447 = vunpack.c.l.b16 %v399
        %v448 = vunpack.c.l.b16 %v400
        %v449 = vunpack.c.l.b16 %v401
        %v450 = vunpack.c.l.b16 %v402
        %v451 = vunpack.c.l.b16 %v403
        %v452 = vunpack.c.l.b16 %v404
        %v453 = vunpack.c.l.b16 %v405
        %v454 = vpack.c.b16 %v439, %v438
        %v455 = vpack.c.b16 %v441, %v440
        %v456 = vpack.c.b16 %v443, %v442
        %v457 = vpack.c.b16 %v445, %v444
        %v458 = vpack.c.b16 %v447, %v446
        %v459 = vpack.c.b16 %v449, %v448
        %v460 = vpack.c.b16 %v451, %v450
        %v461 = vpack.c.b16 %v453, %v452
        %v486 = vunpack.c.l.b16 %v406
        %v487 = vunpack.c.l.b16 %v407
        %v488 = vunpack.c.l.b16 %v408
        %v489 = vunpack.c.l.b16 %v409
        %v490 = vunpack.c.l.b16 %v410
        %v491 = vunpack.c.l.b16 %v411
        %v492 = vunpack.c.l.b16 %v412
        %v493 = vunpack.c.l.b16 %v413
        %v494 = vunpack.c.l.b16 %v414
        %v495 = vunpack.c.l.b16 %v415
        %v496 = vunpack.c.l.b16 %v416
        %v497 = vunpack.c.l.b16 %v417
        %v498 = vunpack.c.l.b16 %v418
        %v499 = vunpack.c.l.b16 %v419
        %v500 = vunpack.c.l.b16 %v420
        %v501 = vunpack.c.l.b16 %v421
        %v502 = vpack.c.b16 %v487, %v486
        %v503 = vpack.c.b16 %v489, %v488
        %v504 = vpack.c.b16 %v491, %v490
        %v505 = vpack.c.b16 %v493, %v492
        %v506 = vpack.c.b16 %v495, %v494
        %v507 = vpack.c.b16 %v497, %v496
        %v508 = vpack.c.b16 %v499, %v498
        %v509 = vpack.c.b16 %v501, %v500
        %518 = vmatprep.subr.bf16.mxu0 0
        %519 = vmatpush1.bf16.msra.mxu0 %v502
        %520 = vmatprep.subr.bf16.mxu0 0
        %521 = vmatpush1.bf16.msra.mxu0 %v503
        %522 = vmatprep.subr.bf16.mxu0 0
        %523 = vmatpush1.bf16.msra.mxu0 %v504
        %524 = vmatprep.subr.bf16.mxu0 0
        %525 = vmatpush1.bf16.msra.mxu0 %v505
        %526 = vmatprep.subr.bf16.mxu0 0
        %527 = vmatpush1.bf16.msra.mxu0 %v506
        %528 = vmatprep.subr.bf16.mxu0 0
        %529 = vmatpush1.bf16.msra.mxu0 %v507
        %530 = vmatprep.subr.bf16.mxu0 0
        %531 = vmatpush1.bf16.msra.mxu0 %v508
        %532 = vmatprep.subr.bf16.mxu0 0
        %533 = vmatpush1.bf16.msra.mxu0 %v509
        %534 = vmatprep.subr.bf16.mxu0 0
        %535 = vmatpush1.bf16.msra.mxu0 0
        %536 = vmatprep.subr.bf16.mxu0 0
        %537 = vmatpush1.bf16.msra.mxu0 0
        %538 = vmatprep.subr.bf16.mxu0 0
        %539 = vmatpush1.bf16.msra.mxu0 0
        %540 = vmatprep.subr.bf16.mxu0 0
        %541 = vmatpush1.bf16.msra.mxu0 0
        %542 = vmatprep.subr.bf16.mxu0 0
        %543 = vmatpush1.bf16.msra.mxu0 0
        %544 = vmatprep.subr.bf16.mxu0 0
        %545 = vmatpush1.bf16.msra.mxu0 0
        %546 = vmatprep.subr.bf16.mxu0 0
        %547 = vmatpush1.bf16.msra.mxu0 0
        %548 = vmatprep.subr.bf16.mxu0 0
        %549 = vmatpush1.bf16.msra.mxu0 0
        %550 = vmatprep.mubr.bf16.mxu0 0
        %551 = vmatmul.mubr.bf16.gmra.mrb[0].mxu0 %v454
        %v552 = vpop.f32.mrb[0].mxu0
        %v553 = vadd.f32 0.0, %v552
        %v554 = vpop.f32.mrb[0].mxu0
        %v555 = vpop.f32.mrb[0].mxu0
        %v556 = vadd.f32 0.0, %v555
        %v557 = vpop.f32.mrb[0].mxu0
        %558 = vmatprep.mubr.bf16.mxu0 0
        %559 = vmatmul.mubr.bf16.gmra.mrb[0].mxu0 %v455
        %v560 = vpop.f32.mrb[0].mxu0
        %v561 = vadd.f32 0.0, %v560
        %v562 = vpop.f32.mrb[0].mxu0
        %v563 = vpop.f32.mrb[0].mxu0
        %v564 = vadd.f32 0.0, %v563
        %v565 = vpop.f32.mrb[0].mxu0
        %566 = vmatprep.mubr.bf16.mxu0 0
        %567 = vmatmul.mubr.bf16.gmra.mrb[0].mxu0 %v456
        %v568 = vpop.f32.mrb[0].mxu0
        %v569 = vadd.f32 0.0, %v568
        %v570 = vpop.f32.mrb[0].mxu0
        %v571 = vpop.f32.mrb[0].mxu0
        %v572 = vadd.f32 0.0, %v571
        %v573 = vpop.f32.mrb[0].mxu0
        %574 = vmatprep.mubr.bf16.mxu0 0
        %575 = vmatmul.mubr.bf16.gmra.mrb[0].mxu0 %v457
        %v576 = vpop.f32.mrb[0].mxu0
        %v577 = vadd.f32 0.0, %v576
        %v578 = vpop.f32.mrb[0].mxu0
        %v579 = vpop.f32.mrb[0].mxu0
        %v580 = vadd.f32 0.0, %v579
        %v581 = vpop.f32.mrb[0].mxu0
        %582 = vmatprep.mubr.bf16.mxu0 0
        %583 = vmatmul.mubr.bf16.gmra.mrb[0].mxu0 %v458
        %v584 = vpop.f32.mrb[0].mxu0
        %v585 = vadd.f32 0.0, %v584
        %v586 = vpop.f32.mrb[0].mxu0
        %v587 = vpop.f32.mrb[0].mxu0
        %v588 = vadd.f32 0.0, %v587
        %v589 = vpop.f32.mrb[0].mxu0
        %590 = vmatprep.mubr.bf16.mxu0 0
        %591 = vmatmul.mubr.bf16.gmra.mrb[0].mxu0 %v459
        %v592 = vpop.f32.mrb[0].mxu0
        %v593 = vadd.f32 0.0, %v592
        %v594 = vpop.f32.mrb[0].mxu0
        %v595 = vpop.f32.mrb[0].mxu0
        %v596 = vadd.f32 0.0, %v595
        %v597 = vpop.f32.mrb[0].mxu0
        %598 = vmatprep.mubr.bf16.mxu0 0
        %599 = vmatmul.mubr.bf16.gmra.mrb[0].mxu0 %v460
        %v600 = vpop.f32.mrb[0].mxu0
        %v601 = vadd.f32 0.0, %v600
        %v602 = vpop.f32.mrb[0].mxu0
        %v603 = vpop.f32.mrb[0].mxu0
        %v604 = vadd.f32 0.0, %v603
        %v605 = vpop.f32.mrb[0].mxu0
        %606 = vmatprep.mubr.bf16.mxu0 0
        %607 = vmatmul.mubr.bf16.gmra.mrb[0].mxu0 %v461
        %v608 = vpop.f32.mrb[0].mxu0
        %v609 = vadd.f32 0.0, %v608
        %v610 = vpop.f32.mrb[0].mxu0
        %v611 = vpop.f32.mrb[0].mxu0
        %v612 = vadd.f32 0.0, %v611
        %v613 = vpop.f32.mrb[0].mxu0
        %614 = vdwg.mxu0
        %v615 = vadd.f32 %v374, %v553
        %v616 = vadd.f32 %v375, %v556
        %v617 = vadd.f32 %v376, %v561
        %v618 = vadd.f32 %v377, %v564
        %v619 = vadd.f32 %v378, %v569
        %v620 = vadd.f32 %v379, %v572
        %v621 = vadd.f32 %v380, %v577
        %v622 = vadd.f32 %v381, %v580
        %v623 = vadd.f32 %v382, %v585
        %v624 = vadd.f32 %v383, %v588
        %v625 = vadd.f32 %v384, %v593
        %v626 = vadd.f32 %v385, %v596
        %v627 = vadd.f32 %v386, %v601
        %v628 = vadd.f32 %v387, %v604
        %v629 = vadd.f32 %v388, %v609
        %v630 = vadd.f32 %v389, %v612
        %631 = vst [vmem:[#allocation2] sm:$0xff] %v615
        %632 = vst [vmem:[#allocation2 + $0x8] sm:$0xff] %v616
        %633 = vst [vmem:[#allocation2 + $0x10] sm:$0xff] %v617
        %634 = vst [vmem:[#allocation2 + $0x18] sm:$0xff] %v618
        %635 = vst [vmem:[#allocation2 + $0x20] sm:$0xff] %v619
        %636 = vst [vmem:[#allocation2 + $0x28] sm:$0xff] %v620
        %637 = vst [vmem:[#allocation2 + $0x30] sm:$0xff] %v621
        %638 = vst [vmem:[#allocation2 + $0x38] sm:$0xff] %v622
        %639 = vst [vmem:[#allocation2 + $0x40] sm:$0xff] %v623
        %640 = vst [vmem:[#allocation2 + $0x48] sm:$0xff] %v624
        %641 = vst [vmem:[#allocation2 + $0x50] sm:$0xff] %v625
        %642 = vst [vmem:[#allocation2 + $0x58] sm:$0xff] %v626
        %643 = vst [vmem:[#allocation2 + $0x60] sm:$0xff] %v627
        %644 = vst [vmem:[#allocation2 + $0x68] sm:$0xff] %v628
        %645 = vst [vmem:[#allocation2 + $0x70] sm:$0xff] %v629
        %646 = vst [vmem:[#allocation2 + $0x78] sm:$0xff] %v630
        %p647 = scmp.eq.s32.totalorder %s21, 8
        // Predicated region
        $region78: #{bottleneck_forward.4} parent=68 // pred_check
          %p648 = pneg %p647
        $region79: #{bottleneck_forward.4} parent=68 // pred_check_branch
          %650 = sbr.rel (%p648) target = $region81
        $region80: #{bottleneck_forward.4} parent=68 // pred_region
          %v651 = vld [vmem:[#allocation2] sm:$0xff]
          %v652 = vld [vmem:[#allocation2 + $0x8] sm:$0xff]
          %v653 = vld [vmem:[#allocation2 + $0x10] sm:$0xff]
          %v654 = vld [vmem:[#allocation2 + $0x18] sm:$0xff]
          %v655 = vld [vmem:[#allocation2 + $0x20] sm:$0xff]
          %v656 = vld [vmem:[#allocation2 + $0x28] sm:$0xff]
          %v657 = vld [vmem:[#allocation2 + $0x30] sm:$0xff]
          %v658 = vld [vmem:[#allocation2 + $0x38] sm:$0xff]
          %v659 = vld [vmem:[#allocation2 + $0x40] sm:$0xff]
          %v660 = vld [vmem:[#allocation2 + $0x48] sm:$0xff]
          %v661 = vld [vmem:[#allocation2 + $0x50] sm:$0xff]
          %v662 = vld [vmem:[#allocation2 + $0x58] sm:$0xff]
          %v663 = vld [vmem:[#allocation2 + $0x60] sm:$0xff]
          %v664 = vld [vmem:[#allocation2 + $0x68] sm:$0xff]
          %v665 = vld [vmem:[#allocation2 + $0x70] sm:$0xff]
          %v666 = vld [vmem:[#allocation2 + $0x78] sm:$0xff]
          %v667 = vld [vmem:[%s343] sm:$0x1]
          %v669 = vlaneseq
          %v670 = vshrl.u32 %v669, 7
          %v671 = vsub.s32 0, %v670
          %v672 = vrot.slane %v667, %v671
          %v674 = vadd.f32 %v651, %v672
          %v675 = vadd.f32 %v652, %v672
          %v676 = vadd.f32 %v653, %v672
          %v677 = vadd.f32 %v654, %v672
          %v678 = vadd.f32 %v655, %v672
          %v679 = vadd.f32 %v656, %v672
          %v680 = vadd.f32 %v657, %v672
          %v681 = vadd.f32 %v658, %v672
          %v682 = vadd.f32 %v659, %v672
          %v683 = vadd.f32 %v660, %v672
          %v684 = vadd.f32 %v661, %v672
          %v685 = vadd.f32 %v662, %v672
          %v686 = vadd.f32 %v663, %v672
          %v687 = vadd.f32 %v664, %v672
          %v688 = vadd.f32 %v665, %v672
          %v689 = vadd.f32 %v666, %v672
          %v690 = vmax.f32 %v674, 0.0
          %v691 = vmax.f32 %v675, 0.0
          %v692 = vmax.f32 %v676, 0.0
          %v693 = vmax.f32 %v677, 0.0
          %v694 = vmax.f32 %v678, 0.0
          %v695 = vmax.f32 %v679, 0.0
          %v696 = vmax.f32 %v680, 0.0
          %v697 = vmax.f32 %v681, 0.0
          %v698 = vmax.f32 %v682, 0.0
          %v699 = vmax.f32 %v683, 0.0
          %v700 = vmax.f32 %v684, 0.0
          %v701 = vmax.f32 %v685, 0.0
          %v702 = vmax.f32 %v686, 0.0
          %v703 = vmax.f32 %v687, 0.0
          %v704 = vmax.f32 %v688, 0.0
          %v705 = vmax.f32 %v689, 0.0
          %v706 = vpack.c.bf16 %v691, %v690
          %v707 = vpack.c.bf16 %v693, %v692
          %v708 = vpack.c.bf16 %v695, %v694
          %v709 = vpack.c.bf16 %v697, %v696
          %v710 = vpack.c.bf16 %v699, %v698
          %v711 = vpack.c.bf16 %v701, %v700
          %v712 = vpack.c.bf16 %v703, %v702
          %v713 = vpack.c.bf16 %v705, %v704
          %v722 = vunpack.c.l.b16 %v706
          %v723 = vunpack.c.h.b16 %v706
          %v724 = vunpack.c.l.b16 %v707
          %v725 = vunpack.c.h.b16 %v707
          %v726 = vunpack.c.l.b16 %v708
          %v727 = vunpack.c.h.b16 %v708
          %v728 = vunpack.c.l.b16 %v709
          %v729 = vunpack.c.h.b16 %v709
          %v730 = vunpack.c.l.b16 %v710
          %v731 = vunpack.c.h.b16 %v710
          %v732 = vunpack.c.l.b16 %v711
          %v733 = vunpack.c.h.b16 %v711
          %v734 = vunpack.c.l.b16 %v712
          %v735 = vunpack.c.h.b16 %v712
          %v736 = vunpack.c.l.b16 %v713
          %v737 = vunpack.c.h.b16 %v713
          %v738 = vpack.c.b16 %v722, %v722
          %v739 = vpack.c.b16 %v723, %v723
          %v740 = vpack.c.b16 %v724, %v724
          %v741 = vpack.c.b16 %v725, %v725
          %v742 = vpack.c.b16 %v726, %v726
          %v743 = vpack.c.b16 %v727, %v727
          %v744 = vpack.c.b16 %v728, %v728
          %v745 = vpack.c.b16 %v729, %v729
          %v746 = vpack.c.b16 %v730, %v730
          %v747 = vpack.c.b16 %v731, %v731
          %v748 = vpack.c.b16 %v732, %v732
          %v749 = vpack.c.b16 %v733, %v733
          %v750 = vpack.c.b16 %v734, %v734
          %v751 = vpack.c.b16 %v735, %v735
          %v752 = vpack.c.b16 %v736, %v736
          %v753 = vpack.c.b16 %v737, %v737
          %770 = vst [vmem:[%s351] sm:$0xf] %v738
          %771 = vst [vmem:[%s351 + $0x4] sm:$0xf] %v739
          %772 = vst [vmem:[%s351 + $0x8] sm:$0xf] %v740
          %773 = vst [vmem:[%s351 + $0xc] sm:$0xf] %v741
          %774 = vst [vmem:[%s351 + $0x10] sm:$0xf] %v742
          %775 = vst [vmem:[%s351 + $0x14] sm:$0xf] %v743
          %776 = vst [vmem:[%s351 + $0x18] sm:$0xf] %v744
          %777 = vst [vmem:[%s351 + $0x1c] sm:$0xf] %v745
          %778 = vst [vmem:[%s351 + $0x20] sm:$0xf] %v746
          %779 = vst [vmem:[%s351 + $0x24] sm:$0xf] %v747
          %780 = vst [vmem:[%s351 + $0x28] sm:$0xf] %v748
          %781 = vst [vmem:[%s351 + $0x2c] sm:$0xf] %v749
          %782 = vst [vmem:[%s351 + $0x30] sm:$0xf] %v750
          %783 = vst [vmem:[%s351 + $0x34] sm:$0xf] %v751
          %784 = vst [vmem:[%s351 + $0x38] sm:$0xf] %v752
          %785 = vst [vmem:[%s351 + $0x3c] sm:$0xf] %v753
        $region81: #{bottleneck_forward.4} parent=68 // pred_fallthru
          _
        %s786 = smul.u32 16, %s19
        %p787 = scmp.lt.s32.totalorder %s786, 15
        %s788 = scalar_select %p787, %s786, 15
        %p789 = scmp.lt.s32.totalorder %s20, 0
        %s790 = scalar_select %p789, %s20, 0
        %s791 = sadd.s32 %s790, %s788
        %s792 = smul.addr %s791, 4
        %s793 = scalar_lea.vmem %s3, %s792
        // Predicated region
        $region82: #{bottleneck_forward.4} parent=68 // pred_check
          %p794 = pneg %p135
        $region83: #{bottleneck_forward.4} parent=68 // pred_check_branch
          %796 = sbr.rel (%p794) target = $region85
        $region84: #{bottleneck_forward.4} parent=68 // pred_region
          %s797 = smul.u32 16, %s19
        $region85: #{bottleneck_forward.4} parent=68 // pred_fallthru
          _
        // Predicated region
        $region86: #{bottleneck_forward.4} parent=68 // pred_check
          %p798 = pneg %p135
        $region87: #{bottleneck_forward.4} parent=68 // pred_check_branch
          %800 = sbr.rel (%p798) target = $region89
        $region88: #{bottleneck_forward.4} parent=68 // pred_region
          %s801 = smul.u32 16, %s19
          %p802 = scmp.lt.s32.totalorder %s801, 15
          %s803 = scalar_select %p802, %s801, 15
          %p804 = scmp.lt.s32.totalorder %s20, 0
          %s805 = scalar_select %p804, %s20, 0
          %s806 = sadd.s32 %s805, %s803
          %s807 = smul.addr %s806, 4
          %s808 = scalar_lea.vmem %s3, %s807
        $region89: #{bottleneck_forward.4} parent=68 // pred_fallthru
          _
      $region69: #{bottleneck_forward.4} parent=5 // pred_fallthru
        _
      %p809 = scmp.le.s32.totalorder 2, %s9
      // Predicated region
      $region90: #{bottleneck_forward.4} parent=5 // pred_check
        %p810 = pneg %p809
      $region91: #{bottleneck_forward.4} parent=5 // pred_check_branch
        %812 = sbr.rel (%p810) target = $region93
      $region92: #{bottleneck_forward.4} parent=5 // pred_region
        %s813 = ssub.s32 %s9, 2
      $region93: #{bottleneck_forward.4} parent=5 // pred_fallthru
        _
    $region6: #{bottleneck_forward.4} parent=1 // loop_footer
      %s13 = sadd.s32 1, %s9
    $region7: #{bottleneck_forward.4} parent=1 // loop_footer_branch
      %8 = sbr.rel target = $region3
    $region8: #{bottleneck_forward.4} parent=1 // loop_exit
      _

</llo_original>
